<compile_context>
chip_gen: v7x
topology: tpu7x:2x2x1
jax: 0.10.0
libtpu: 0.0.40
codegen_flags: <defaults>
</compile_context>

<pallas_src>
import functools

import jax
import jax.numpy as jnp
from jax import lax
from jax.experimental import pallas as pl
from jax.experimental.pallas import tpu as pltpu


def _round_up(x, m):
    return ((x + m - 1) // m) * m


def recurrent_kernel(seq_ref, conv_ref, wx_ref, wc_ref, wh_ref, bfold_ref,
                     bhn_ref, wout_ref, bout_ref,
                     logp_ref, hid_ref,
                     gi_ref, hs_ref,
                     *, seqlen, batch, hidden_size, hp):
    """Single-invocation kernel: full GRU rollout, deferred vocab/log_softmax."""
    f32 = jnp.float32
    S, B, H, HP = seqlen, batch, hidden_size, hp

    # ---- Preamble (runs once) --------------------------------------------
    # Input-side projections for ALL timesteps in a single MXU op (hoisted out
    # of the serial recurrence), stored to VMEM scratch.
    gi_ref[...] = jnp.dot(seq_ref[...], wx_ref[...],
                          preferred_element_type=f32)            # (S*B, 3*HP)

    # Time-invariant context contribution + folded biases (r,z: b_ih + b_hh;
    # n: b_in only — b_hn must stay with the hidden-side term).
    c_all = (jnp.dot(conv_ref[...], wc_ref[...], preferred_element_type=f32)
             + bfold_ref[...])                                    # (B, 3*HP)

    wh = wh_ref[...]                                              # (HP, 3*HP)
    b_hn = bhn_ref[...]                                           # (1, 3*HP), n-block only

    # ---- Serial GRU recurrence: ONE fused MXU matmul per step -------------
    def step(t, h):
        start = pl.multiple_of(t * B, B)
        pre = gi_ref[pl.ds(start, B), :] + c_all                  # (B, 3*HP)
        gh = jnp.dot(h, wh, preferred_element_type=f32) + b_hn    # (B, 3*HP)

        # Gate slices at lane offsets 0 / HP / 2*HP — vreg-aligned, no extracts.
        r = jax.nn.sigmoid(pre[:, 0 * HP:1 * HP] + gh[:, 0 * HP:1 * HP])
        z = jax.nn.sigmoid(pre[:, 1 * HP:2 * HP] + gh[:, 1 * HP:2 * HP])
        n = jnp.tanh(pre[:, 2 * HP:3 * HP] + r * gh[:, 2 * HP:3 * HP])
        h_new = (1.0 - z) * n + z * h                             # (B, HP)

        hs_ref[pl.ds(start, B), :] = h_new
        return h_new

    h0 = jnp.zeros((B, HP), f32)        # PyTorch init_hidden(): zeros
    h_final = lax.fori_loop(0, S, step, h0, unroll=True)
    # TODO(synk): switch to partial unroll (unroll=2..4) if seqlen grows past ~32.

    # ---- Deferred vocab projection + log_softmax (once, over all steps) ----
    hs_all = hs_ref[...]                                          # (S*B, HP)
    logits = (jnp.dot(hs_all, wout_ref[...], preferred_element_type=f32)
              + bout_ref[...])                                    # (S*B, V)
    m = jnp.max(logits, axis=-1, keepdims=True)
    shifted = logits - m
    lse = jnp.log(jnp.sum(jnp.exp(shifted), axis=-1, keepdims=True))
    logp_ref[...] = shifted - lse                                 # one lane-dense slab store
    hid_ref[...] = h_final[:, :H]                                 # written once, at the end


def prepare_slabs(params, *, word_embdim, conv_outsize, hidden_size, vocab_size):
    """One-time re-layout of PyTorch-shaped parameters into lane-padded slabs.

    Call this once when parameters are loaded — NOT per forward call.
      w_ih (3H, E+C), w_hh (3H, H), b_ih (3H,), b_hh (3H,), w_out (V, H), b_out (V,)
    Gate order is PyTorch's (r, z, n); gate g occupies lanes [g*HP, g*HP + H).
    """
    E, C, H, V = word_embdim, conv_outsize, hidden_size, vocab_size
    HP = _round_up(H, 128)
    P = 3 * HP

    w_ih = jnp.asarray(params["w_ih"], jnp.float32)
    w_hh = jnp.asarray(params["w_hh"], jnp.float32)
    b_ih = jnp.asarray(params["b_ih"], jnp.float32)
    b_hh = jnp.asarray(params["b_hh"], jnp.float32)

    wx = jnp.zeros((E, P), jnp.float32)
    wc = jnp.zeros((C, P), jnp.float32)
    wh = jnp.zeros((HP, P), jnp.float32)
    for g in range(3):
        rows = w_ih[g * H:(g + 1) * H]                              # (H, E + C)
        wx = wx.at[:, g * HP:g * HP + H].set(rows[:, :E].T)
        wc = wc.at[:, g * HP:g * HP + H].set(rows[:, E:].T)
        wh = wh.at[:H, g * HP:g * HP + H].set(w_hh[g * H:(g + 1) * H].T)

    b_fold = jnp.zeros((1, P), jnp.float32)
    b_fold = b_fold.at[0, 0 * HP:0 * HP + H].set(b_ih[:H] + b_hh[:H])               # r
    b_fold = b_fold.at[0, 1 * HP:1 * HP + H].set(b_ih[H:2 * H] + b_hh[H:2 * H])     # z
    b_fold = b_fold.at[0, 2 * HP:2 * HP + H].set(b_ih[2 * H:])                      # n (input bias)
    b_hn = jnp.zeros((1, P), jnp.float32)
    b_hn = b_hn.at[0, 2 * HP:2 * HP + H].set(b_hh[2 * H:])                          # n (hidden bias)

    wout = jnp.zeros((HP, V), jnp.float32).at[:H, :].set(
        jnp.asarray(params["w_out"], jnp.float32).T)
    bout = jnp.asarray(params["b_out"], jnp.float32).reshape(1, V)

    return dict(wx=wx, wc=wc, wh=wh, b_fold=b_fold, b_hn=b_hn,
                wout=wout, bout=bout, hp=HP)


def recurrent_net_forward(seqembd, convfeatvects, slabs, hidden_size):
    """seqembd: (S, B, E), convfeatvects: (B, C) -> (log_probs (S,B,V), hidden (B,H))."""
    S, B, E = seqembd.shape
    H = hidden_size
    HP = slabs["hp"]
    V = slabs["wout"].shape[1]

    kernel = functools.partial(recurrent_kernel, seqlen=S, batch=B,
                               hidden_size=H, hp=HP)

    seq2d = seqembd.reshape(S * B, E)    # reshape in the wrapper; kernel stays reshape-free

    # Single invocation, no grid: every input/output is a full-array VMEM block.
    # Total footprint (~0.5 MiB incl. padded slabs/scratch) is far under the
    # default scoped VMEM limit on v5e/v6e/v7x.
    log_probs2d, hidden = pl.pallas_call(
        kernel,
        out_shape=(
            jax.ShapeDtypeStruct((S * B, V), jnp.float32),   # lane-dense logp slab
            jax.ShapeDtypeStruct((B, H), jnp.float32),
        ),
        scratch_shapes=[
            pltpu.VMEM((S * B, 3 * HP), jnp.float32),        # hoisted input projections
            pltpu.VMEM((S * B, HP), jnp.float32),            # per-step hidden states
        ],
    )(seq2d, convfeatvects, slabs["wx"], slabs["wc"], slabs["wh"],
      slabs["b_fold"], slabs["b_hn"], slabs["wout"], slabs["bout"])

    return log_probs2d.reshape(S, B, V), hidden


def reference_forward(seqembd, convfeatvects, params, hidden_size):
    """Pure-JAX reference mirroring the PyTorch forward (concat + fused gates)."""
    S, B, _ = seqembd.shape
    H = hidden_size
    w_ih_t, w_hh_t = params["w_ih"].T, params["w_hh"].T
    b_ih, b_hh = params["b_ih"], params["b_hh"]
    w_out_t, b_out = params["w_out"].T, params["b_out"]

    def gru_step(h, x_t):
        x = jnp.concatenate([x_t, convfeatvects], axis=1)
        gi = x @ w_ih_t + b_ih
        gh = h @ w_hh_t + b_hh
        i_r, i_z, i_n = gi[:, :H], gi[:, H:2 * H], gi[:, 2 * H:]
        h_r, h_z, h_n = gh[:, :H], gh[:, H:2 * H], gh[:, 2 * H:]
        r = jax.nn.sigmoid(i_r + h_r)
        z = jax.nn.sigmoid(i_z + h_z)
        n = jnp.tanh(i_n + r * h_n)
        h_new = (1.0 - z) * n + z * h
        logits = h_new @ w_out_t + b_out
        return h_new, jax.nn.log_softmax(logits, axis=-1)

    h0 = jnp.zeros((B, H), jnp.float32)
    h_final, logps = jax.lax.scan(gru_step, h0, seqembd)
    return logps, h_final


if __name__ == "__main__":
    # dict_args (attention=False, dropout=0.0)
    conv_outsize = 16
    word_embdim = 16
    vocab_size = 128
    hidden_size = 32
    batch_size = 8
    seqlen = 8
    in_size = word_embdim + conv_outsize

    key = jax.random.PRNGKey(0)
    ks = jax.random.split(key, 8)
    scale = 1.0 / jnp.sqrt(hidden_size)

    # Deterministic synthetic parameters in PyTorch shapes.
    params = {
        "w_ih": jax.random.uniform(ks[0], (3 * hidden_size, in_size), jnp.float32, -scale, scale),
        "w_hh": jax.random.uniform(ks[1], (3 * hidden_size, hidden_size), jnp.float32, -scale, scale),
        "b_ih": jax.random.uniform(ks[2], (3 * hidden_size,), jnp.float32, -scale, scale),
        "b_hh": jax.random.uniform(ks[3], (3 * hidden_size,), jnp.float32, -scale, scale),
        "w_out": jax.random.uniform(ks[4], (vocab_size, hidden_size), jnp.float32, -scale, scale),
        "b_out": jax.random.uniform(ks[5], (vocab_size,), jnp.float32, -scale, scale),
    }

    seqembd = jax.random.normal(ks[6], (seqlen, batch_size, word_embdim), jnp.float32)
    convfeatvects = jax.random.normal(ks[7], (batch_size, conv_outsize), jnp.float32)

    # One-time weight re-layout (hoisted out of the per-call path).
    slabs = prepare_slabs(params, word_embdim=word_embdim, conv_outsize=conv_outsize,
                          hidden_size=hidden_size, vocab_size=vocab_size)
    slabs = jax.block_until_ready(slabs)

    log_probs, hidden = recurrent_net_forward(seqembd, convfeatvects, slabs, hidden_size)
    log_probs, hidden = jax.block_until_ready((log_probs, hidden))

    # Correctness check against a pure-JAX mirror of the PyTorch forward.
    ref_lp, ref_h = reference_forward(seqembd, convfeatvects, params, hidden_size)
    assert jnp.allclose(log_probs, ref_lp, atol=5e-5, rtol=5e-5)
    assert jnp.allclose(hidden, ref_h, atol=5e-5, rtol=5e-5)

    print("KERNEL_OK")
</pallas_src>

<mosaic_0001>
module attributes {stable_mosaic.version = 11 : i64} {
  func.func @recurrent_kernel(%arg0: memref<64x16xf32, #tpu.memory_space<vmem>>, %arg1: memref<8x16xf32, #tpu.memory_space<vmem>>, %arg2: memref<16x384xf32, #tpu.memory_space<vmem>>, %arg3: memref<16x384xf32, #tpu.memory_space<vmem>>, %arg4: memref<128x384xf32, #tpu.memory_space<vmem>>, %arg5: memref<1x384xf32, #tpu.memory_space<vmem>>, %arg6: memref<1x384xf32, #tpu.memory_space<vmem>>, %arg7: memref<128x128xf32, #tpu.memory_space<vmem>>, %arg8: memref<1x128xf32, #tpu.memory_space<vmem>>, %arg9: memref<64x128xf32, #tpu.memory_space<vmem>>, %arg10: memref<8x32xf32, #tpu.memory_space<vmem>>, %arg11: memref<64x384xf32, #tpu.memory_space<vmem>>, %arg12: memref<64x128xf32, #tpu.memory_space<vmem>>) attributes {dimension_semantics = [], scalar_prefetch = 0 : i64, scratch_operands = 2 : i64, tpu.core_type = #tpu.core_type<tc>} {
    %c0 = arith.constant 0 : index
    %c0_0 = arith.constant 0 : index
    %0 = vector.load %arg0[%c0, %c0_0] : memref<64x16xf32, #tpu.memory_space<vmem>>, vector<64x16xf32>
    %c0_1 = arith.constant 0 : index
    %c0_2 = arith.constant 0 : index
    %1 = vector.load %arg2[%c0_1, %c0_2] : memref<16x384xf32, #tpu.memory_space<vmem>>, vector<16x384xf32>
    %cst = arith.constant dense<0.000000e+00> : vector<64x384xf32>
    %2 = tpu.matmul %0, %1, %cst {dimension_numbers = #tpu.dot_dimension_numbers<[1], [0], [0], [1], [0, 0, 1, 1], [], []>} : vector<64x16xf32>, vector<16x384xf32>, vector<64x384xf32> -> vector<64x384xf32>
    %c0_3 = arith.constant 0 : index
    %c0_4 = arith.constant 0 : index
    %3 = vector.load %arg11[%c0_3, %c0_4] : memref<64x384xf32, #tpu.memory_space<vmem>>, vector<64x384xf32>
    tpu.vector_store %arg11[%c0_3, %c0_4], %2 {strides = array<i32>} : memref<64x384xf32, #tpu.memory_space<vmem>>, vector<64x384xf32>,
    %c0_5 = arith.constant 0 : index
    %c0_6 = arith.constant 0 : index
    %4 = vector.load %arg1[%c0_5, %c0_6] : memref<8x16xf32, #tpu.memory_space<vmem>>, vector<8x16xf32>
    %c0_7 = arith.constant 0 : index
    %c0_8 = arith.constant 0 : index
    %5 = vector.load %arg3[%c0_7, %c0_8] : memref<16x384xf32, #tpu.memory_space<vmem>>, vector<16x384xf32>
    %cst_9 = arith.constant dense<0.000000e+00> : vector<8x384xf32>
    %6 = tpu.matmul %4, %5, %cst_9 {dimension_numbers = #tpu.dot_dimension_numbers<[1], [0], [0], [1], [0, 0, 1, 1], [], []>} : vector<8x16xf32>, vector<16x384xf32>, vector<8x384xf32> -> vector<8x384xf32>
    %c0_10 = arith.constant 0 : index
    %c0_11 = arith.constant 0 : index
    %7 = vector.load %arg5[%c0_10, %c0_11] : memref<1x384xf32, #tpu.memory_space<vmem>>, vector<1x384xf32>
    %8 = vector.broadcast %7 : vector<1x384xf32> to vector<8x384xf32>
    %9 = arith.addf %6, %8 : vector<8x384xf32>
    %c0_12 = arith.constant 0 : index
    %c0_13 = arith.constant 0 : index
    %10 = vector.load %arg4[%c0_12, %c0_13] : memref<128x384xf32, #tpu.memory_space<vmem>>, vector<128x384xf32>
    %c0_14 = arith.constant 0 : index
    %c0_15 = arith.constant 0 : index
    %11 = vector.load %arg6[%c0_14, %c0_15] : memref<1x384xf32, #tpu.memory_space<vmem>>, vector<1x384xf32>
    %cst_16 = arith.constant 0.000000e+00 : f32
    %12 = vector.broadcast %cst_16 : f32 to vector<8x128xf32>
    %c0_i32 = arith.constant 0 : i32
    %c8_i32 = arith.constant 8 : i32
    %13 = arith.muli %c0_i32, %c8_i32 : i32
    %14 = tpu.assume_multiple %13, 8 : i32
    %15 = arith.index_cast %14 : i32 to index
    %c0_17 = arith.constant 0 : index
    %16 = vector.load %arg11[%15, %c0_17] : memref<64x384xf32, #tpu.memory_space<vmem>>, vector<8x384xf32>
    %17 = arith.addf %16, %9 : vector<8x384xf32>
    %cst_18 = arith.constant dense<0.000000e+00> : vector<8x384xf32>
    %18 = tpu.matmul %12, %10, %cst_18 {dimension_numbers = #tpu.dot_dimension_numbers<[1], [0], [0], [1], [0, 0, 1, 1], [], []>} : vector<8x128xf32>, vector<128x384xf32>, vector<8x384xf32> -> vector<8x384xf32>
    %19 = vector.broadcast %11 : vector<1x384xf32> to vector<8x384xf32>
    %20 = arith.addf %18, %19 : vector<8x384xf32>
    %21 = vector.extract_strided_slice %17 {offsets = [0, 0], sizes = [8, 128], strides = [1, 1]} : vector<8x384xf32> to vector<8x128xf32>
    %22 = vector.extract_strided_slice %20 {offsets = [0, 0], sizes = [8, 128], strides = [1, 1]} : vector<8x384xf32> to vector<8x128xf32>
    %23 = arith.addf %21, %22 : vector<8x128xf32>
    %24 = arith.negf %23 : vector<8x128xf32>
    %25 = math.exp %24 : vector<8x128xf32>
    %cst_19 = arith.constant 1.000000e+00 : f32
    %26 = vector.broadcast %cst_19 : f32 to vector<8x128xf32>
    %27 = arith.addf %26, %25 : vector<8x128xf32>
    %28 = arith.divf %26, %27 : vector<8x128xf32>
    %29 = vector.extract_strided_slice %17 {offsets = [0, 128], sizes = [8, 128], strides = [1, 1]} : vector<8x384xf32> to vector<8x128xf32>
    %30 = vector.extract_strided_slice %20 {offsets = [0, 128], sizes = [8, 128], strides = [1, 1]} : vector<8x384xf32> to vector<8x128xf32>
    %31 = arith.addf %29, %30 : vector<8x128xf32>
    %32 = arith.negf %31 : vector<8x128xf32>
    %33 = math.exp %32 : vector<8x128xf32>
    %cst_20 = arith.constant 1.000000e+00 : f32
    %34 = vector.broadcast %cst_20 : f32 to vector<8x128xf32>
    %35 = arith.addf %34, %33 : vector<8x128xf32>
    %36 = arith.divf %34, %35 : vector<8x128xf32>
    %37 = vector.extract_strided_slice %17 {offsets = [0, 256], sizes = [8, 128], strides = [1, 1]} : vector<8x384xf32> to vector<8x128xf32>
    %38 = vector.extract_strided_slice %20 {offsets = [0, 256], sizes = [8, 128], strides = [1, 1]} : vector<8x384xf32> to vector<8x128xf32>
    %39 = arith.mulf %28, %38 : vector<8x128xf32>
    %40 = arith.addf %37, %39 : vector<8x128xf32>
    %41 = math.tanh %40 : vector<8x128xf32>
    %cst_21 = arith.constant 1.000000e+00 : f32
    %42 = vector.broadcast %cst_21 : f32 to vector<8x128xf32>
    %43 = arith.subf %42, %36 : vector<8x128xf32>
    %44 = arith.mulf %43, %41 : vector<8x128xf32>
    %45 = arith.mulf %36, %12 : vector<8x128xf32>
    %46 = arith.addf %44, %45 : vector<8x128xf32>
    %47 = arith.index_cast %14 : i32 to index
    %c0_22 = arith.constant 0 : index
    %48 = vector.load %arg12[%47, %c0_22] : memref<64x128xf32, #tpu.memory_space<vmem>>, vector<8x128xf32>
    tpu.vector_store %arg12[%47, %c0_22], %46 {strides = array<i32>} : memref<64x128xf32, #tpu.memory_space<vmem>>, vector<8x128xf32>,
    %c1_i32 = arith.constant 1 : i32
    %c8_i32_23 = arith.constant 8 : i32
    %49 = arith.muli %c1_i32, %c8_i32_23 : i32
    %50 = tpu.assume_multiple %49, 8 : i32
    %51 = arith.index_cast %50 : i32 to index
    %c0_24 = arith.constant 0 : index
    %52 = vector.load %arg11[%51, %c0_24] : memref<64x384xf32, #tpu.memory_space<vmem>>, vector<8x384xf32>
    %53 = arith.addf %52, %9 : vector<8x384xf32>
    %cst_25 = arith.constant dense<0.000000e+00> : vector<8x384xf32>
    %54 = tpu.matmul %46, %10, %cst_25 {dimension_numbers = #tpu.dot_dimension_numbers<[1], [0], [0], [1], [0, 0, 1, 1], [], []>} : vector<8x128xf32>, vector<128x384xf32>, vector<8x384xf32> -> vector<8x384xf32>
    %55 = vector.broadcast %11 : vector<1x384xf32> to vector<8x384xf32>
    %56 = arith.addf %54, %55 : vector<8x384xf32>
    %57 = vector.extract_strided_slice %53 {offsets = [0, 0], sizes = [8, 128], strides = [1, 1]} : vector<8x384xf32> to vector<8x128xf32>
    %58 = vector.extract_strided_slice %56 {offsets = [0, 0], sizes = [8, 128], strides = [1, 1]} : vector<8x384xf32> to vector<8x128xf32>
    %59 = arith.addf %57, %58 : vector<8x128xf32>
    %60 = arith.negf %59 : vector<8x128xf32>
    %61 = math.exp %60 : vector<8x128xf32>
    %cst_26 = arith.constant 1.000000e+00 : f32
    %62 = vector.broadcast %cst_26 : f32 to vector<8x128xf32>
    %63 = arith.addf %62, %61 : vector<8x128xf32>
    %64 = arith.divf %62, %63 : vector<8x128xf32>
    %65 = vector.extract_strided_slice %53 {offsets = [0, 128], sizes = [8, 128], strides = [1, 1]} : vector<8x384xf32> to vector<8x128xf32>
    %66 = vector.extract_strided_slice %56 {offsets = [0, 128], sizes = [8, 128], strides = [1, 1]} : vector<8x384xf32> to vector<8x128xf32>
    %67 = arith.addf %65, %66 : vector<8x128xf32>
    %68 = arith.negf %67 : vector<8x128xf32>
    %69 = math.exp %68 : vector<8x128xf32>
    %cst_27 = arith.constant 1.000000e+00 : f32
    %70 = vector.broadcast %cst_27 : f32 to vector<8x128xf32>
    %71 = arith.addf %70, %69 : vector<8x128xf32>
    %72 = arith.divf %70, %71 : vector<8x128xf32>
    %73 = vector.extract_strided_slice %53 {offsets = [0, 256], sizes = [8, 128], strides = [1, 1]} : vector<8x384xf32> to vector<8x128xf32>
    %74 = vector.extract_strided_slice %56 {offsets = [0, 256], sizes = [8, 128], strides = [1, 1]} : vector<8x384xf32> to vector<8x128xf32>
    %75 = arith.mulf %64, %74 : vector<8x128xf32>
    %76 = arith.addf %73, %75 : vector<8x128xf32>
    %77 = math.tanh %76 : vector<8x128xf32>
    %cst_28 = arith.constant 1.000000e+00 : f32
    %78 = vector.broadcast %cst_28 : f32 to vector<8x128xf32>
    %79 = arith.subf %78, %72 : vector<8x128xf32>
    %80 = arith.mulf %79, %77 : vector<8x128xf32>
    %81 = arith.mulf %72, %46 : vector<8x128xf32>
    %82 = arith.addf %80, %81 : vector<8x128xf32>
    %83 = arith.index_cast %50 : i32 to index
    %c0_29 = arith.constant 0 : index
    %84 = vector.load %arg12[%83, %c0_29] : memref<64x128xf32, #tpu.memory_space<vmem>>, vector<8x128xf32>
    tpu.vector_store %arg12[%83, %c0_29], %82 {strides = array<i32>} : memref<64x128xf32, #tpu.memory_space<vmem>>, vector<8x128xf32>,
    %c2_i32 = arith.constant 2 : i32
    %c8_i32_30 = arith.constant 8 : i32
    %85 = arith.muli %c2_i32, %c8_i32_30 : i32
    %86 = tpu.assume_multiple %85, 8 : i32
    %87 = arith.index_cast %86 : i32 to index
    %c0_31 = arith.constant 0 : index
    %88 = vector.load %arg11[%87, %c0_31] : memref<64x384xf32, #tpu.memory_space<vmem>>, vector<8x384xf32>
    %89 = arith.addf %88, %9 : vector<8x384xf32>
    %cst_32 = arith.constant dense<0.000000e+00> : vector<8x384xf32>
    %90 = tpu.matmul %82, %10, %cst_32 {dimension_numbers = #tpu.dot_dimension_numbers<[1], [0], [0], [1], [0, 0, 1, 1], [], []>} : vector<8x128xf32>, vector<128x384xf32>, vector<8x384xf32> -> vector<8x384xf32>
    %91 = vector.broadcast %11 : vector<1x384xf32> to vector<8x384xf32>
    %92 = arith.addf %90, %91 : vector<8x384xf32>
    %93 = vector.extract_strided_slice %89 {offsets = [0, 0], sizes = [8, 128], strides = [1, 1]} : vector<8x384xf32> to vector<8x128xf32>
    %94 = vector.extract_strided_slice %92 {offsets = [0, 0], sizes = [8, 128], strides = [1, 1]} : vector<8x384xf32> to vector<8x128xf32>
    %95 = arith.addf %93, %94 : vector<8x128xf32>
    %96 = arith.negf %95 : vector<8x128xf32>
    %97 = math.exp %96 : vector<8x128xf32>
    %cst_33 = arith.constant 1.000000e+00 : f32
    %98 = vector.broadcast %cst_33 : f32 to vector<8x128xf32>
    %99 = arith.addf %98, %97 : vector<8x128xf32>
    %100 = arith.divf %98, %99 : vector<8x128xf32>
    %101 = vector.extract_strided_slice %89 {offsets = [0, 128], sizes = [8, 128], strides = [1, 1]} : vector<8x384xf32> to vector<8x128xf32>
    %102 = vector.extract_strided_slice %92 {offsets = [0, 128], sizes = [8, 128], strides = [1, 1]} : vector<8x384xf32> to vector<8x128xf32>
    %103 = arith.addf %101, %102 : vector<8x128xf32>
    %104 = arith.negf %103 : vector<8x128xf32>
    %105 = math.exp %104 : vector<8x128xf32>
    %cst_34 = arith.constant 1.000000e+00 : f32
    %106 = vector.broadcast %cst_34 : f32 to vector<8x128xf32>
    %107 = arith.addf %106, %105 : vector<8x128xf32>
    %108 = arith.divf %106, %107 : vector<8x128xf32>
    %109 = vector.extract_strided_slice %89 {offsets = [0, 256], sizes = [8, 128], strides = [1, 1]} : vector<8x384xf32> to vector<8x128xf32>
    %110 = vector.extract_strided_slice %92 {offsets = [0, 256], sizes = [8, 128], strides = [1, 1]} : vector<8x384xf32> to vector<8x128xf32>
    %111 = arith.mulf %100, %110 : vector<8x128xf32>
    %112 = arith.addf %109, %111 : vector<8x128xf32>
    %113 = math.tanh %112 : vector<8x128xf32>
    %cst_35 = arith.constant 1.000000e+00 : f32
    %114 = vector.broadcast %cst_35 : f32 to vector<8x128xf32>
    %115 = arith.subf %114, %108 : vector<8x128xf32>
    %116 = arith.mulf %115, %113 : vector<8x128xf32>
    %117 = arith.mulf %108, %82 : vector<8x128xf32>
    %118 = arith.addf %116, %117 : vector<8x128xf32>
    %119 = arith.index_cast %86 : i32 to index
    %c0_36 = arith.constant 0 : index
    %120 = vector.load %arg12[%119, %c0_36] : memref<64x128xf32, #tpu.memory_space<vmem>>, vector<8x128xf32>
    tpu.vector_store %arg12[%119, %c0_36], %118 {strides = array<i32>} : memref<64x128xf32, #tpu.memory_space<vmem>>, vector<8x128xf32>,
    %c3_i32 = arith.constant 3 : i32
    %c8_i32_37 = arith.constant 8 : i32
    %121 = arith.muli %c3_i32, %c8_i32_37 : i32
    %122 = tpu.assume_multiple %121, 8 : i32
    %123 = arith.index_cast %122 : i32 to index
    %c0_38 = arith.constant 0 : index
    %124 = vector.load %arg11[%123, %c0_38] : memref<64x384xf32, #tpu.memory_space<vmem>>, vector<8x384xf32>
    %125 = arith.addf %124, %9 : vector<8x384xf32>
    %cst_39 = arith.constant dense<0.000000e+00> : vector<8x384xf32>
    %126 = tpu.matmul %118, %10, %cst_39 {dimension_numbers = #tpu.dot_dimension_numbers<[1], [0], [0], [1], [0, 0, 1, 1], [], []>} : vector<8x128xf32>, vector<128x384xf32>, vector<8x384xf32> -> vector<8x384xf32>
    %127 = vector.broadcast %11 : vector<1x384xf32> to vector<8x384xf32>
    %128 = arith.addf %126, %127 : vector<8x384xf32>
    %129 = vector.extract_strided_slice %125 {offsets = [0, 0], sizes = [8, 128], strides = [1, 1]} : vector<8x384xf32> to vector<8x128xf32>
    %130 = vector.extract_strided_slice %128 {offsets = [0, 0], sizes = [8, 128], strides = [1, 1]} : vector<8x384xf32> to vector<8x128xf32>
    %131 = arith.addf %129, %130 : vector<8x128xf32>
    %132 = arith.negf %131 : vector<8x128xf32>
    %133 = math.exp %132 : vector<8x128xf32>
    %cst_40 = arith.constant 1.000000e+00 : f32
    %134 = vector.broadcast %cst_40 : f32 to vector<8x128xf32>
    %135 = arith.addf %134, %133 : vector<8x128xf32>
    %136 = arith.divf %134, %135 : vector<8x128xf32>
    %137 = vector.extract_strided_slice %125 {offsets = [0, 128], sizes = [8, 128], strides = [1, 1]} : vector<8x384xf32> to vector<8x128xf32>
    %138 = vector.extract_strided_slice %128 {offsets = [0, 128], sizes = [8, 128], strides = [1, 1]} : vector<8x384xf32> to vector<8x128xf32>
    %139 = arith.addf %137, %138 : vector<8x128xf32>
    %140 = arith.negf %139 : vector<8x128xf32>
    %141 = math.exp %140 : vector<8x128xf32>
    %cst_41 = arith.constant 1.000000e+00 : f32
    %142 = vector.broadcast %cst_41 : f32 to vector<8x128xf32>
    %143 = arith.addf %142, %141 : vector<8x128xf32>
    %144 = arith.divf %142, %143 : vector<8x128xf32>
    %145 = vector.extract_strided_slice %125 {offsets = [0, 256], sizes = [8, 128], strides = [1, 1]} : vector<8x384xf32> to vector<8x128xf32>
    %146 = vector.extract_strided_slice %128 {offsets = [0, 256], sizes = [8, 128], strides = [1, 1]} : vector<8x384xf32> to vector<8x128xf32>
    %147 = arith.mulf %136, %146 : vector<8x128xf32>
    %148 = arith.addf %145, %147 : vector<8x128xf32>
    %149 = math.tanh %148 : vector<8x128xf32>
    %cst_42 = arith.constant 1.000000e+00 : f32
    %150 = vector.broadcast %cst_42 : f32 to vector<8x128xf32>
    %151 = arith.subf %150, %144 : vector<8x128xf32>
    %152 = arith.mulf %151, %149 : vector<8x128xf32>
    %153 = arith.mulf %144, %118 : vector<8x128xf32>
    %154 = arith.addf %152, %153 : vector<8x128xf32>
    %155 = arith.index_cast %122 : i32 to index
    %c0_43 = arith.constant 0 : index
    %156 = vector.load %arg12[%155, %c0_43] : memref<64x128xf32, #tpu.memory_space<vmem>>, vector<8x128xf32>
    tpu.vector_store %arg12[%155, %c0_43], %154 {strides = array<i32>} : memref<64x128xf32, #tpu.memory_space<vmem>>, vector<8x128xf32>,
    %c4_i32 = arith.constant 4 : i32
    %c8_i32_44 = arith.constant 8 : i32
    %157 = arith.muli %c4_i32, %c8_i32_44 : i32
    %158 = tpu.assume_multiple %157, 8 : i32
    %159 = arith.index_cast %158 : i32 to index
    %c0_45 = arith.constant 0 : index
    %160 = vector.load %arg11[%159, %c0_45] : memref<64x384xf32, #tpu.memory_space<vmem>>, vector<8x384xf32>
    %161 = arith.addf %160, %9 : vector<8x384xf32>
    %cst_46 = arith.constant dense<0.000000e+00> : vector<8x384xf32>
    %162 = tpu.matmul %154, %10, %cst_46 {dimension_numbers = #tpu.dot_dimension_numbers<[1], [0], [0], [1], [0, 0, 1, 1], [], []>} : vector<8x128xf32>, vector<128x384xf32>, vector<8x384xf32> -> vector<8x384xf32>
    %163 = vector.broadcast %11 : vector<1x384xf32> to vector<8x384xf32>
    %164 = arith.addf %162, %163 : vector<8x384xf32>
    %165 = vector.extract_strided_slice %161 {offsets = [0, 0], sizes = [8, 128], strides = [1, 1]} : vector<8x384xf32> to vector<8x128xf32>
    %166 = vector.extract_strided_slice %164 {offsets = [0, 0], sizes = [8, 128], strides = [1, 1]} : vector<8x384xf32> to vector<8x128xf32>
    %167 = arith.addf %165, %166 : vector<8x128xf32>
    %168 = arith.negf %167 : vector<8x128xf32>
    %169 = math.exp %168 : vector<8x128xf32>
    %cst_47 = arith.constant 1.000000e+00 : f32
    %170 = vector.broadcast %cst_47 : f32 to vector<8x128xf32>
    %171 = arith.addf %170, %169 : vector<8x128xf32>
    %172 = arith.divf %170, %171 : vector<8x128xf32>
    %173 = vector.extract_strided_slice %161 {offsets = [0, 128], sizes = [8, 128], strides = [1, 1]} : vector<8x384xf32> to vector<8x128xf32>
    %174 = vector.extract_strided_slice %164 {offsets = [0, 128], sizes = [8, 128], strides = [1, 1]} : vector<8x384xf32> to vector<8x128xf32>
    %175 = arith.addf %173, %174 : vector<8x128xf32>
    %176 = arith.negf %175 : vector<8x128xf32>
    %177 = math.exp %176 : vector<8x128xf32>
    %cst_48 = arith.constant 1.000000e+00 : f32
    %178 = vector.broadcast %cst_48 : f32 to vector<8x128xf32>
    %179 = arith.addf %178, %177 : vector<8x128xf32>
    %180 = arith.divf %178, %179 : vector<8x128xf32>
    %181 = vector.extract_strided_slice %161 {offsets = [0, 256], sizes = [8, 128], strides = [1, 1]} : vector<8x384xf32> to vector<8x128xf32>
    %182 = vector.extract_strided_slice %164 {offsets = [0, 256], sizes = [8, 128], strides = [1, 1]} : vector<8x384xf32> to vector<8x128xf32>
    %183 = arith.mulf %172, %182 : vector<8x128xf32>
    %184 = arith.addf %181, %183 : vector<8x128xf32>
    %185 = math.tanh %184 : vector<8x128xf32>
    %cst_49 = arith.constant 1.000000e+00 : f32
    %186 = vector.broadcast %cst_49 : f32 to vector<8x128xf32>
    %187 = arith.subf %186, %180 : vector<8x128xf32>
    %188 = arith.mulf %187, %185 : vector<8x128xf32>
    %189 = arith.mulf %180, %154 : vector<8x128xf32>
    %190 = arith.addf %188, %189 : vector<8x128xf32>
    %191 = arith.index_cast %158 : i32 to index
    %c0_50 = arith.constant 0 : index
    %192 = vector.load %arg12[%191, %c0_50] : memref<64x128xf32, #tpu.memory_space<vmem>>, vector<8x128xf32>
    tpu.vector_store %arg12[%191, %c0_50], %190 {strides = array<i32>} : memref<64x128xf32, #tpu.memory_space<vmem>>, vector<8x128xf32>,
    %c5_i32 = arith.constant 5 : i32
    %c8_i32_51 = arith.constant 8 : i32
    %193 = arith.muli %c5_i32, %c8_i32_51 : i32
    %194 = tpu.assume_multiple %193, 8 : i32
    %195 = arith.index_cast %194 : i32 to index
    %c0_52 = arith.constant 0 : index
    %196 = vector.load %arg11[%195, %c0_52] : memref<64x384xf32, #tpu.memory_space<vmem>>, vector<8x384xf32>
    %197 = arith.addf %196, %9 : vector<8x384xf32>
    %cst_53 = arith.constant dense<0.000000e+00> : vector<8x384xf32>
    %198 = tpu.matmul %190, %10, %cst_53 {dimension_numbers = #tpu.dot_dimension_numbers<[1], [0], [0], [1], [0, 0, 1, 1], [], []>} : vector<8x128xf32>, vector<128x384xf32>, vector<8x384xf32> -> vector<8x384xf32>
    %199 = vector.broadcast %11 : vector<1x384xf32> to vector<8x384xf32>
    %200 = arith.addf %198, %199 : vector<8x384xf32>
    %201 = vector.extract_strided_slice %197 {offsets = [0, 0], sizes = [8, 128], strides = [1, 1]} : vector<8x384xf32> to vector<8x128xf32>
    %202 = vector.extract_strided_slice %200 {offsets = [0, 0], sizes = [8, 128], strides = [1, 1]} : vector<8x384xf32> to vector<8x128xf32>
    %203 = arith.addf %201, %202 : vector<8x128xf32>
    %204 = arith.negf %203 : vector<8x128xf32>
    %205 = math.exp %204 : vector<8x128xf32>
    %cst_54 = arith.constant 1.000000e+00 : f32
    %206 = vector.broadcast %cst_54 : f32 to vector<8x128xf32>
    %207 = arith.addf %206, %205 : vector<8x128xf32>
    %208 = arith.divf %206, %207 : vector<8x128xf32>
    %209 = vector.extract_strided_slice %197 {offsets = [0, 128], sizes = [8, 128], strides = [1, 1]} : vector<8x384xf32> to vector<8x128xf32>
    %210 = vector.extract_strided_slice %200 {offsets = [0, 128], sizes = [8, 128], strides = [1, 1]} : vector<8x384xf32> to vector<8x128xf32>
    %211 = arith.addf %209, %210 : vector<8x128xf32>
    %212 = arith.negf %211 : vector<8x128xf32>
    %213 = math.exp %212 : vector<8x128xf32>
    %cst_55 = arith.constant 1.000000e+00 : f32
    %214 = vector.broadcast %cst_55 : f32 to vector<8x128xf32>
    %215 = arith.addf %214, %213 : vector<8x128xf32>
    %216 = arith.divf %214, %215 : vector<8x128xf32>
    %217 = vector.extract_strided_slice %197 {offsets = [0, 256], sizes = [8, 128], strides = [1, 1]} : vector<8x384xf32> to vector<8x128xf32>
    %218 = vector.extract_strided_slice %200 {offsets = [0, 256], sizes = [8, 128], strides = [1, 1]} : vector<8x384xf32> to vector<8x128xf32>
    %219 = arith.mulf %208, %218 : vector<8x128xf32>
    %220 = arith.addf %217, %219 : vector<8x128xf32>
    %221 = math.tanh %220 : vector<8x128xf32>
    %cst_56 = arith.constant 1.000000e+00 : f32
    %222 = vector.broadcast %cst_56 : f32 to vector<8x128xf32>
    %223 = arith.subf %222, %216 : vector<8x128xf32>
    %224 = arith.mulf %223, %221 : vector<8x128xf32>
    %225 = arith.mulf %216, %190 : vector<8x128xf32>
    %226 = arith.addf %224, %225 : vector<8x128xf32>
    %227 = arith.index_cast %194 : i32 to index
    %c0_57 = arith.constant 0 : index
    %228 = vector.load %arg12[%227, %c0_57] : memref<64x128xf32, #tpu.memory_space<vmem>>, vector<8x128xf32>
    tpu.vector_store %arg12[%227, %c0_57], %226 {strides = array<i32>} : memref<64x128xf32, #tpu.memory_space<vmem>>, vector<8x128xf32>,
    %c6_i32 = arith.constant 6 : i32
    %c8_i32_58 = arith.constant 8 : i32
    %229 = arith.muli %c6_i32, %c8_i32_58 : i32
    %230 = tpu.assume_multiple %229, 8 : i32
    %231 = arith.index_cast %230 : i32 to index
    %c0_59 = arith.constant 0 : index
    %232 = vector.load %arg11[%231, %c0_59] : memref<64x384xf32, #tpu.memory_space<vmem>>, vector<8x384xf32>
    %233 = arith.addf %232, %9 : vector<8x384xf32>
    %cst_60 = arith.constant dense<0.000000e+00> : vector<8x384xf32>
    %234 = tpu.matmul %226, %10, %cst_60 {dimension_numbers = #tpu.dot_dimension_numbers<[1], [0], [0], [1], [0, 0, 1, 1], [], []>} : vector<8x128xf32>, vector<128x384xf32>, vector<8x384xf32> -> vector<8x384xf32>
    %235 = vector.broadcast %11 : vector<1x384xf32> to vector<8x384xf32>
    %236 = arith.addf %234, %235 : vector<8x384xf32>
    %237 = vector.extract_strided_slice %233 {offsets = [0, 0], sizes = [8, 128], strides = [1, 1]} : vector<8x384xf32> to vector<8x128xf32>
    %238 = vector.extract_strided_slice %236 {offsets = [0, 0], sizes = [8, 128], strides = [1, 1]} : vector<8x384xf32> to vector<8x128xf32>
    %239 = arith.addf %237, %238 : vector<8x128xf32>
    %240 = arith.negf %239 : vector<8x128xf32>
    %241 = math.exp %240 : vector<8x128xf32>
    %cst_61 = arith.constant 1.000000e+00 : f32
    %242 = vector.broadcast %cst_61 : f32 to vector<8x128xf32>
    %243 = arith.addf %242, %241 : vector<8x128xf32>
    %244 = arith.divf %242, %243 : vector<8x128xf32>
    %245 = vector.extract_strided_slice %233 {offsets = [0, 128], sizes = [8, 128], strides = [1, 1]} : vector<8x384xf32> to vector<8x128xf32>
    %246 = vector.extract_strided_slice %236 {offsets = [0, 128], sizes = [8, 128], strides = [1, 1]} : vector<8x384xf32> to vector<8x128xf32>
    %247 = arith.addf %245, %246 : vector<8x128xf32>
    %248 = arith.negf %247 : vector<8x128xf32>
    %249 = math.exp %248 : vector<8x128xf32>
    %cst_62 = arith.constant 1.000000e+00 : f32
    %250 = vector.broadcast %cst_62 : f32 to vector<8x128xf32>
    %251 = arith.addf %250, %249 : vector<8x128xf32>
    %252 = arith.divf %250, %251 : vector<8x128xf32>
    %253 = vector.extract_strided_slice %233 {offsets = [0, 256], sizes = [8, 128], strides = [1, 1]} : vector<8x384xf32> to vector<8x128xf32>
    %254 = vector.extract_strided_slice %236 {offsets = [0, 256], sizes = [8, 128], strides = [1, 1]} : vector<8x384xf32> to vector<8x128xf32>
    %255 = arith.mulf %244, %254 : vector<8x128xf32>
    %256 = arith.addf %253, %255 : vector<8x128xf32>
    %257 = math.tanh %256 : vector<8x128xf32>
    %cst_63 = arith.constant 1.000000e+00 : f32
    %258 = vector.broadcast %cst_63 : f32 to vector<8x128xf32>
    %259 = arith.subf %258, %252 : vector<8x128xf32>
    %260 = arith.mulf %259, %257 : vector<8x128xf32>
    %261 = arith.mulf %252, %226 : vector<8x128xf32>
    %262 = arith.addf %260, %261 : vector<8x128xf32>
    %263 = arith.index_cast %230 : i32 to index
    %c0_64 = arith.constant 0 : index
    %264 = vector.load %arg12[%263, %c0_64] : memref<64x128xf32, #tpu.memory_space<vmem>>, vector<8x128xf32>
    tpu.vector_store %arg12[%263, %c0_64], %262 {strides = array<i32>} : memref<64x128xf32, #tpu.memory_space<vmem>>, vector<8x128xf32>,
    %c7_i32 = arith.constant 7 : i32
    %c8_i32_65 = arith.constant 8 : i32
    %265 = arith.muli %c7_i32, %c8_i32_65 : i32
    %266 = tpu.assume_multiple %265, 8 : i32
    %267 = arith.index_cast %266 : i32 to index
    %c0_66 = arith.constant 0 : index
    %268 = vector.load %arg11[%267, %c0_66] : memref<64x384xf32, #tpu.memory_space<vmem>>, vector<8x384xf32>
    %269 = arith.addf %268, %9 : vector<8x384xf32>
    %cst_67 = arith.constant dense<0.000000e+00> : vector<8x384xf32>
    %270 = tpu.matmul %262, %10, %cst_67 {dimension_numbers = #tpu.dot_dimension_numbers<[1], [0], [0], [1], [0, 0, 1, 1], [], []>} : vector<8x128xf32>, vector<128x384xf32>, vector<8x384xf32> -> vector<8x384xf32>
    %271 = vector.broadcast %11 : vector<1x384xf32> to vector<8x384xf32>
    %272 = arith.addf %270, %271 : vector<8x384xf32>
    %273 = vector.extract_strided_slice %269 {offsets = [0, 0], sizes = [8, 128], strides = [1, 1]} : vector<8x384xf32> to vector<8x128xf32>
    %274 = vector.extract_strided_slice %272 {offsets = [0, 0], sizes = [8, 128], strides = [1, 1]} : vector<8x384xf32> to vector<8x128xf32>
    %275 = arith.addf %273, %274 : vector<8x128xf32>
    %276 = arith.negf %275 : vector<8x128xf32>
    %277 = math.exp %276 : vector<8x128xf32>
    %cst_68 = arith.constant 1.000000e+00 : f32
    %278 = vector.broadcast %cst_68 : f32 to vector<8x128xf32>
    %279 = arith.addf %278, %277 : vector<8x128xf32>
    %280 = arith.divf %278, %279 : vector<8x128xf32>
    %281 = vector.extract_strided_slice %269 {offsets = [0, 128], sizes = [8, 128], strides = [1, 1]} : vector<8x384xf32> to vector<8x128xf32>
    %282 = vector.extract_strided_slice %272 {offsets = [0, 128], sizes = [8, 128], strides = [1, 1]} : vector<8x384xf32> to vector<8x128xf32>
    %283 = arith.addf %281, %282 : vector<8x128xf32>
    %284 = arith.negf %283 : vector<8x128xf32>
    %285 = math.exp %284 : vector<8x128xf32>
    %cst_69 = arith.constant 1.000000e+00 : f32
    %286 = vector.broadcast %cst_69 : f32 to vector<8x128xf32>
    %287 = arith.addf %286, %285 : vector<8x128xf32>
    %288 = arith.divf %286, %287 : vector<8x128xf32>
    %289 = vector.extract_strided_slice %269 {offsets = [0, 256], sizes = [8, 128], strides = [1, 1]} : vector<8x384xf32> to vector<8x128xf32>
    %290 = vector.extract_strided_slice %272 {offsets = [0, 256], sizes = [8, 128], strides = [1, 1]} : vector<8x384xf32> to vector<8x128xf32>
    %291 = arith.mulf %280, %290 : vector<8x128xf32>
    %292 = arith.addf %289, %291 : vector<8x128xf32>
    %293 = math.tanh %292 : vector<8x128xf32>
    %cst_70 = arith.constant 1.000000e+00 : f32
    %294 = vector.broadcast %cst_70 : f32 to vector<8x128xf32>
    %295 = arith.subf %294, %288 : vector<8x128xf32>
    %296 = arith.mulf %295, %293 : vector<8x128xf32>
    %297 = arith.mulf %288, %262 : vector<8x128xf32>
    %298 = arith.addf %296, %297 : vector<8x128xf32>
    %299 = arith.index_cast %266 : i32 to index
    %c0_71 = arith.constant 0 : index
    %300 = vector.load %arg12[%299, %c0_71] : memref<64x128xf32, #tpu.memory_space<vmem>>, vector<8x128xf32>
    tpu.vector_store %arg12[%299, %c0_71], %298 {strides = array<i32>} : memref<64x128xf32, #tpu.memory_space<vmem>>, vector<8x128xf32>,
    %c8_i32_72 = arith.constant 8 : i32
    %c0_73 = arith.constant 0 : index
    %c0_74 = arith.constant 0 : index
    %301 = vector.load %arg12[%c0_73, %c0_74] : memref<64x128xf32, #tpu.memory_space<vmem>>, vector<64x128xf32>
    %c0_75 = arith.constant 0 : index
    %c0_76 = arith.constant 0 : index
    %302 = vector.load %arg7[%c0_75, %c0_76] : memref<128x128xf32, #tpu.memory_space<vmem>>, vector<128x128xf32>
    %cst_77 = arith.constant dense<0.000000e+00> : vector<64x128xf32>
    %303 = tpu.matmul %301, %302, %cst_77 {dimension_numbers = #tpu.dot_dimension_numbers<[1], [0], [0], [1], [0, 0, 1, 1], [], []>} : vector<64x128xf32>, vector<128x128xf32>, vector<64x128xf32> -> vector<64x128xf32>
    %c0_78 = arith.constant 0 : index
    %c0_79 = arith.constant 0 : index
    %304 = vector.load %arg8[%c0_78, %c0_79] : memref<1x128xf32, #tpu.memory_space<vmem>>, vector<1x128xf32>
    %305 = vector.broadcast %304 : vector<1x128xf32> to vector<64x128xf32>
    %306 = arith.addf %303, %305 : vector<64x128xf32>
    %cst_80 = arith.constant dense<0xFF800000> : vector<64xf32>
    %307 = vector.multi_reduction <maximumf>, %306, %cst_80 [1] : vector<64x128xf32> to vector<64xf32>
    %308 = vector.shape_cast %307 : vector<64xf32> to vector<64x1xf32>
    %309 = vector.broadcast %308 : vector<64x1xf32> to vector<64x128xf32>
    %310 = arith.subf %306, %309 : vector<64x128xf32>
    %311 = math.exp %310 : vector<64x128xf32>
    %cst_81 = arith.constant dense<0.000000e+00> : vector<64xf32>
    %312 = vector.multi_reduction <add>, %311, %cst_81 [1] : vector<64x128xf32> to vector<64xf32>
    %313 = vector.shape_cast %312 : vector<64xf32> to vector<64x1xf32>
    %314 = math.log %313 : vector<64x1xf32>
    %315 = vector.broadcast %314 : vector<64x1xf32> to vector<64x128xf32>
    %316 = arith.subf %310, %315 : vector<64x128xf32>
    %c0_82 = arith.constant 0 : index
    %c0_83 = arith.constant 0 : index
    %317 = vector.load %arg9[%c0_82, %c0_83] : memref<64x128xf32, #tpu.memory_space<vmem>>, vector<64x128xf32>
    tpu.vector_store %arg9[%c0_82, %c0_83], %316 {strides = array<i32>} : memref<64x128xf32, #tpu.memory_space<vmem>>, vector<64x128xf32>,
    %318 = vector.extract_strided_slice %298 {offsets = [0, 0], sizes = [8, 32], strides = [1, 1]} : vector<8x128xf32> to vector<8x32xf32>
    %c0_84 = arith.constant 0 : index
    %c0_85 = arith.constant 0 : index
    %319 = vector.load %arg10[%c0_84, %c0_85] : memref<8x32xf32, #tpu.memory_space<vmem>>, vector<8x32xf32>
    tpu.vector_store %arg10[%c0_84, %c0_85], %318 {strides = array<i32>} : memref<8x32xf32, #tpu.memory_space<vmem>>, vector<8x32xf32>,
    return
  }
}

</mosaic_0001>

<llo_original>
// kernel: tpu_custom_call.1
$region0: #{tpu_custom_call.1}
  #allocation0 [shape = 'u32[]', space=smem, size = 0x4, offset = 0x4, fixed_abs, tag = 'smem constant byte address 0x4 - core index']
  #allocation1 [shape = 'u32[144,128]{1,0:T(1,128)}', space=vmem, size = 0x12000, scoped, tag = 'internal scratch']
  #allocation2 [shape = 'f32[64,384]{1,0:T(8,128)}', space=vmem, size = 0x18000, scoped, tag = 'scratch operand']
  #allocation3 [shape = 'f32[64,128]{1,0:T(8,128)}', space=vmem, size = 0x8000, scoped, tag = 'scratch operand']
  %s0 = inlined_call_operand.vmem [shape: f32[64,16], index: 0, kind: input, shape index: {}]
  %s1 = inlined_call_operand.vmem [shape: f32[8,16], index: 1, kind: input, shape index: {}]
  %s2 = inlined_call_operand.vmem [shape: f32[16,384], index: 2, kind: input, shape index: {}]
  %s3 = inlined_call_operand.hbm [shape: f32[16,384], index: 3, kind: input, shape index: {}]
  %s4 = inlined_call_operand.hbm [shape: f32[128,384], index: 4, kind: input, shape index: {}]
  %s5 = inlined_call_operand.vmem [shape: f32[1,384], index: 5, kind: input, shape index: {}]
  %s6 = inlined_call_operand.vmem [shape: f32[1,384], index: 6, kind: input, shape index: {}]
  %s7 = inlined_call_operand.hbm [shape: f32[128,128], index: 7, kind: input, shape index: {}]
  %s8 = inlined_call_operand.vmem [shape: f32[1,128], index: 8, kind: input, shape index: {}]
  %s9 = inlined_call_operand.hbm [shape: f32[64,128], index: 9, kind: output, shape index: {0}]
  %s10 = inlined_call_operand.hbm [shape: f32[8,32], index: 10, kind: output, shape index: {1}]
  %11 = xla_tuple %s9, %s10
  %s12 = sld [smem:[#allocation0]]
  $region66: #{tpu_custom_call.1} parent=0
    _
  %s14 = ssub.s32 1, %s12
  %s15 = scalar_select 0, %s14, %s12
  $region1: #{tpu_custom_call.1} parent=0
    #allocation4 [shape = 'u8[24576]{0}', space=vmem, size = 0x6000, scoped, tag = 'input window, operand 3, single buffered']
    #allocation5 [shape = 's32[1]{0}', space=sflag, size = 0x4, scoped, tag = 'scoped memory for tpu_custom_call.1']
    #allocation6 [shape = 's32[1]{0}', space=sflag, size = 0x4, scoped, tag = 'scoped memory for tpu_custom_call.1']
    #allocation7 [shape = 'u8[196608]{0}', space=vmem, size = 0x30000, scoped, tag = 'input window, operand 4, single buffered']
    #allocation8 [shape = 's32[1]{0}', space=sflag, size = 0x4, scoped, tag = 'scoped memory for tpu_custom_call.1']
    #allocation9 [shape = 'u8[65536]{0}', space=vmem, size = 0x10000, scoped, tag = 'input window, operand 7, single buffered']
    #allocation10 [shape = 'u8[32768]{0}', space=vmem, size = 0x8000, scoped, tag = 'output window, operand 0, single buffered']
    #allocation11 [shape = 'u8[4096]{0}', space=vmem, size = 0x1000, scoped, tag = 'output window, operand 1, single buffered']
    #allocation12 [shape = 's32[1]{0}', space=sflag, size = 0x4, scoped, tag = 'scoped memory for tpu_custom_call.1']
    %16 = vsyncpa [#allocation5], 0
    %17 = vsyncpa [#allocation8], 0
    %18 = vsyncpa [#allocation6], 0
    %19 = vsyncpa [#allocation12], 0
    // Predicated region
    $region2: #{tpu_custom_call.1} parent=1 // pred_check
      _
    $region3: #{tpu_custom_call.1} parent=1 // pred_check_branch
      %21 = sbr.rel (0) target = $region5
    $region4: #{tpu_custom_call.1} parent=1 // pred_region
      _
    $region5: #{tpu_custom_call.1} parent=1 // pred_fallthru
      _
    // Predicated region
    $region6: #{tpu_custom_call.1} parent=1 // pred_check
      _
    $region7: #{tpu_custom_call.1} parent=1 // pred_check_branch
      %23 = sbr.rel (0) target = $region9
    $region8: #{tpu_custom_call.1} parent=1 // pred_region
      _
    $region9: #{tpu_custom_call.1} parent=1 // pred_fallthru
      _
    // Predicated region
    $region10: #{tpu_custom_call.1} parent=1 // pred_check
      _
    $region11: #{tpu_custom_call.1} parent=1 // pred_check_branch
      %25 = sbr.rel (0) target = $region13
    $region12: #{tpu_custom_call.1} parent=1 // pred_region
      _
    $region13: #{tpu_custom_call.1} parent=1 // pred_fallthru
      _
    // Predicated region
    $region14: #{tpu_custom_call.1} parent=1 // pred_check
      _
    $region15: #{tpu_custom_call.1} parent=1 // pred_check_branch
      %27 = sbr.rel (0) target = $region17
    $region16: #{tpu_custom_call.1} parent=1 // pred_region
      %s29 = ssub.s32 768, 768
      %30 = vsyncadd [#allocation5], %s29
      %s31 = sshll.u32 [#allocation4], 4
      %s32 = int_to_ptr.vmem [resolvable:$true] %s31
      %37 = dma.hbm_to_vmem [thread:$0]  %s3, 768, %s32, [#allocation5], 384, 384, 24
    $region17: #{tpu_custom_call.1} parent=1 // pred_fallthru
      _
    // Predicated region
    $region18: #{tpu_custom_call.1} parent=1 // pred_check
      _
    $region19: #{tpu_custom_call.1} parent=1 // pred_check_branch
      %39 = sbr.rel (0) target = $region21
    $region20: #{tpu_custom_call.1} parent=1 // pred_region
      %s41 = ssub.s32 6144, 6144
      %42 = vsyncadd [#allocation8], %s41
      %s43 = sshll.u32 [#allocation7], 4
      %s44 = int_to_ptr.vmem [resolvable:$true] %s43
      %49 = dma.hbm_to_vmem [thread:$0]  %s4, 6144, %s44, [#allocation8], 384, 384, 24
    $region21: #{tpu_custom_call.1} parent=1 // pred_fallthru
      _
    // Predicated region
    $region22: #{tpu_custom_call.1} parent=1 // pred_check
      _
    $region23: #{tpu_custom_call.1} parent=1 // pred_check_branch
      %51 = sbr.rel (0) target = $region25
    $region24: #{tpu_custom_call.1} parent=1 // pred_region
      _
    $region25: #{tpu_custom_call.1} parent=1 // pred_fallthru
      _
    // Predicated region
    $region26: #{tpu_custom_call.1} parent=1 // pred_check
      _
    $region27: #{tpu_custom_call.1} parent=1 // pred_check_branch
      %53 = sbr.rel (0) target = $region29
    $region28: #{tpu_custom_call.1} parent=1 // pred_region
      _
    $region29: #{tpu_custom_call.1} parent=1 // pred_fallthru
      _
    // Predicated region
    $region30: #{tpu_custom_call.1} parent=1 // pred_check
      _
    $region31: #{tpu_custom_call.1} parent=1 // pred_check_branch
      %55 = sbr.rel (0) target = $region33
    $region32: #{tpu_custom_call.1} parent=1 // pred_region
      %s57 = ssub.s32 2048, 2048
      %58 = vsyncadd [#allocation8], %s57
      %s59 = sshll.u32 [#allocation9], 4
      %s60 = int_to_ptr.vmem [resolvable:$true] %s59
      %65 = dma.hbm_to_vmem [thread:$0]  %s7, 2048, %s60, [#allocation8], 128, 128, 8
    $region33: #{tpu_custom_call.1} parent=1 // pred_fallthru
      _
    // Predicated region
    $region34: #{tpu_custom_call.1} parent=1 // pred_check
      _
    $region35: #{tpu_custom_call.1} parent=1 // pred_check_branch
      %67 = sbr.rel (0) target = $region37
    $region36: #{tpu_custom_call.1} parent=1 // pred_region
      _
    $region37: #{tpu_custom_call.1} parent=1 // pred_fallthru
      _
    // Predicated region
    $region38: #{tpu_custom_call.1} parent=1 // pred_check
      _
    $region39: #{tpu_custom_call.1} parent=1 // pred_check_branch
      %69 = sbr.rel (0) target = $region41
    $region40: #{tpu_custom_call.1} parent=1 // pred_region
      %70 = dma.done [#allocation5], 768
    $region41: #{tpu_custom_call.1} parent=1 // pred_fallthru
      _
    // Predicated region
    $region42: #{tpu_custom_call.1} parent=1 // pred_check
      _
    $region43: #{tpu_custom_call.1} parent=1 // pred_check_branch
      %72 = sbr.rel (0) target = $region45
    $region44: #{tpu_custom_call.1} parent=1 // pred_region
      %73 = dma.done [#allocation8], 6144
    $region45: #{tpu_custom_call.1} parent=1 // pred_fallthru
      _
    // Predicated region
    $region46: #{tpu_custom_call.1} parent=1 // pred_check
      _
    $region47: #{tpu_custom_call.1} parent=1 // pred_check_branch
      %75 = sbr.rel (0) target = $region49
    $region48: #{tpu_custom_call.1} parent=1 // pred_region
      %76 = dma.done [#allocation8], 2048
    $region49: #{tpu_custom_call.1} parent=1 // pred_fallthru
      _
    %v77 = vld [vmem:[%s0] sm:$0xff]
    %v78 = vld [vmem:[%s0 + $0x8] sm:$0xff]
    %v79 = vld [vmem:[%s0 + $0x10] sm:$0xff]
    %v80 = vld [vmem:[%s0 + $0x18] sm:$0xff]
    %v81 = vld [vmem:[%s0 + $0x20] sm:$0xff]
    %v82 = vld [vmem:[%s0 + $0x28] sm:$0xff]
    %v83 = vld [vmem:[%s0 + $0x30] sm:$0xff]
    %v84 = vld [vmem:[%s0 + $0x38] sm:$0xff]
    %v85 = vld [vmem:[%s2] sm:$0xff]
    %v86 = vld [vmem:[%s2 + $0x8] sm:$0xff]
    %v87 = vld [vmem:[%s2 + $0x10] sm:$0xff]
    %v88 = vld [vmem:[%s2 + $0x18] sm:$0xff]
    %v89 = vld [vmem:[%s2 + $0x20] sm:$0xff]
    %v90 = vld [vmem:[%s2 + $0x28] sm:$0xff]
    %vm91 = vcmask 130048
    %v93 = vsel %vm91, %v77, 0
    %v96 = vsel %vm91, %v78, 0
    %v99 = vsel %vm91, %v79, 0
    %v102 = vsel %vm91, %v80, 0
    %v105 = vsel %vm91, %v81, 0
    %v108 = vsel %vm91, %v82, 0
    %v111 = vsel %vm91, %v83, 0
    %v114 = vsel %vm91, %v84, 0
    %116 = vmatprep.subr.mxu0 %v86
    %117 = vmatpush1.msra.mxu0 %v85
    %118 = vmatprep.subr.mxu0 %v89
    %119 = vmatpush1.msra.mxu0 %v88
    %120 = vmatprep.subr.mxu0 0.0
    %121 = vmatpush1.msra.mxu0 0.0
    %122 = vmatprep.subr.mxu0 0.0
    %123 = vmatpush1.msra.mxu0 0.0
    %124 = vmatprep.subr.mxu0 0.0
    %125 = vmatpush1.msra.mxu0 0.0
    %126 = vmatprep.subr.mxu0 0.0
    %127 = vmatpush1.msra.mxu0 0.0
    %128 = vmatprep.subr.mxu0 0.0
    %129 = vmatpush1.msra.mxu0 0.0
    %130 = vmatprep.subr.mxu0 0.0
    %131 = vmatpush1.msra.mxu0 0.0
    %132 = vmatprep.subr.mxu0 0.0
    %133 = vmatpush1.msra.mxu0 0.0
    %134 = vmatprep.subr.mxu0 0.0
    %135 = vmatpush1.msra.mxu0 0.0
    %136 = vmatprep.subr.mxu0 0.0
    %137 = vmatpush1.msra.mxu0 0.0
    %138 = vmatprep.subr.mxu0 0.0
    %139 = vmatpush1.msra.mxu0 0.0
    %140 = vmatprep.subr.mxu0 0.0
    %141 = vmatpush1.msra.mxu0 0.0
    %142 = vmatprep.subr.mxu0 0.0
    %143 = vmatpush1.msra.mxu0 0.0
    %144 = vmatprep.subr.mxu0 0.0
    %145 = vmatpush1.msra.mxu0 0.0
    %146 = vmatprep.subr.mxu0 0.0
    %147 = vmatpush1.msra.mxu0 0.0
    %148 = vmatprep.subr.mxu0 0.0
    %149 = vmatpush1.msra.mxu0 0.0
    %150 = vmatprep.subr.mxu0 0.0
    %151 = vmatpush1.msra.mxu0 0.0
    %152 = vmatprep.subr.mxu0 0.0
    %153 = vmatpush1.msra.mxu0 0.0
    %154 = vmatprep.subr.mxu0 0.0
    %155 = vmatpush1.msra.mxu0 0.0
    %156 = vmatprep.subr.mxu0 0.0
    %157 = vmatpush1.msra.mxu0 0.0
    %158 = vmatprep.subr.mxu0 0.0
    %159 = vmatpush1.msra.mxu0 0.0
    %160 = vmatprep.subr.mxu0 0.0
    %161 = vmatpush1.msra.mxu0 0.0
    %162 = vmatprep.subr.mxu0 0.0
    %163 = vmatpush1.msra.mxu0 0.0
    %164 = vmatprep.subr.mxu0 0.0
    %165 = vmatpush1.msra.mxu0 0.0
    %166 = vmatprep.subr.mxu0 0.0
    %167 = vmatpush1.msra.mxu0 0.0
    %168 = vmatprep.subr.mxu0 0.0
    %169 = vmatpush1.msra.mxu0 0.0
    %170 = vmatprep.subr.mxu0 0.0
    %171 = vmatpush1.msra.mxu0 0.0
    %172 = vmatprep.subr.mxu0 0.0
    %173 = vmatpush1.msra.mxu0 0.0
    %174 = vmatprep.subr.mxu0 0.0
    %175 = vmatpush1.msra.mxu0 0.0
    %176 = vmatprep.subr.mxu0 0.0
    %177 = vmatpush1.msra.mxu0 0.0
    %178 = vmatprep.subr.mxu0 0.0
    %179 = vmatpush1.msra.mxu0 0.0
    %180 = vmatprep.mubr.f32.mxu0 0.0
    %181 = vmatmul.mubr.f32.gmra.mrb[0].mxu0 %v93
    %v182 = vpop.f32.mrb[0].mxu0
    %v183 = vadd.f32 0.0, %v182
    %v184 = vpop.f32.mrb[0].mxu0
    %v185 = vadd.f32 0.0, %v184
    %186 = vmatprep.mubr.f32.mxu0 0.0
    %187 = vmatmul.mubr.f32.gmra.mrb[0].mxu0 %v96
    %v188 = vpop.f32.mrb[0].mxu0
    %v189 = vadd.f32 0.0, %v188
    %v190 = vpop.f32.mrb[0].mxu0
    %v191 = vadd.f32 0.0, %v190
    %192 = vmatprep.mubr.f32.mxu0 0.0
    %193 = vmatmul.mubr.f32.gmra.mrb[0].mxu0 %v99
    %v194 = vpop.f32.mrb[0].mxu0
    %v195 = vadd.f32 0.0, %v194
    %v196 = vpop.f32.mrb[0].mxu0
    %v197 = vadd.f32 0.0, %v196
    %198 = vmatprep.mubr.f32.mxu0 0.0
    %199 = vmatmul.mubr.f32.gmra.mrb[0].mxu0 %v102
    %v200 = vpop.f32.mrb[0].mxu0
    %v201 = vadd.f32 0.0, %v200
    %v202 = vpop.f32.mrb[0].mxu0
    %v203 = vadd.f32 0.0, %v202
    %204 = vmatprep.mubr.f32.mxu0 0.0
    %205 = vmatmul.mubr.f32.gmra.mrb[0].mxu0 %v105
    %v206 = vpop.f32.mrb[0].mxu0
    %v207 = vadd.f32 0.0, %v206
    %v208 = vpop.f32.mrb[0].mxu0
    %v209 = vadd.f32 0.0, %v208
    %210 = vmatprep.mubr.f32.mxu0 0.0
    %211 = vmatmul.mubr.f32.gmra.mrb[0].mxu0 %v108
    %v212 = vpop.f32.mrb[0].mxu0
    %v213 = vadd.f32 0.0, %v212
    %v214 = vpop.f32.mrb[0].mxu0
    %v215 = vadd.f32 0.0, %v214
    %216 = vmatprep.mubr.f32.mxu0 0.0
    %217 = vmatmul.mubr.f32.gmra.mrb[0].mxu0 %v111
    %v218 = vpop.f32.mrb[0].mxu0
    %v219 = vadd.f32 0.0, %v218
    %v220 = vpop.f32.mrb[0].mxu0
    %v221 = vadd.f32 0.0, %v220
    %222 = vmatprep.mubr.f32.mxu0 0.0
    %223 = vmatmul.mubr.f32.gmra.mrb[0].mxu0 %v114
    %v224 = vpop.f32.mrb[0].mxu0
    %v225 = vadd.f32 0.0, %v224
    %v226 = vpop.f32.mrb[0].mxu0
    %v227 = vadd.f32 0.0, %v226
    %228 = vdwg.mxu0
    %229 = vmatprep.subr.mxu0 0.0
    %230 = vmatpush1.msra.mxu0 %v87
    %231 = vmatprep.subr.mxu0 0.0
    %232 = vmatpush1.msra.mxu0 %v90
    %233 = vmatprep.subr.mxu0 0.0
    %234 = vmatpush1.msra.mxu0 0.0
    %235 = vmatprep.subr.mxu0 0.0
    %236 = vmatpush1.msra.mxu0 0.0
    %237 = vmatprep.subr.mxu0 0.0
    %238 = vmatpush1.msra.mxu0 0.0
    %239 = vmatprep.subr.mxu0 0.0
    %240 = vmatpush1.msra.mxu0 0.0
    %241 = vmatprep.subr.mxu0 0.0
    %242 = vmatpush1.msra.mxu0 0.0
    %243 = vmatprep.subr.mxu0 0.0
    %244 = vmatpush1.msra.mxu0 0.0
    %245 = vmatprep.subr.mxu0 0.0
    %246 = vmatpush1.msra.mxu0 0.0
    %247 = vmatprep.subr.mxu0 0.0
    %248 = vmatpush1.msra.mxu0 0.0
    %249 = vmatprep.subr.mxu0 0.0
    %250 = vmatpush1.msra.mxu0 0.0
    %251 = vmatprep.subr.mxu0 0.0
    %252 = vmatpush1.msra.mxu0 0.0
    %253 = vmatprep.subr.mxu0 0.0
    %254 = vmatpush1.msra.mxu0 0.0
    %255 = vmatprep.subr.mxu0 0.0
    %256 = vmatpush1.msra.mxu0 0.0
    %257 = vmatprep.subr.mxu0 0.0
    %258 = vmatpush1.msra.mxu0 0.0
    %259 = vmatprep.subr.mxu0 0.0
    %260 = vmatpush1.msra.mxu0 0.0
    %261 = vmatprep.subr.mxu0 0.0
    %262 = vmatpush1.msra.mxu0 0.0
    %263 = vmatprep.subr.mxu0 0.0
    %264 = vmatpush1.msra.mxu0 0.0
    %265 = vmatprep.subr.mxu0 0.0
    %266 = vmatpush1.msra.mxu0 0.0
    %267 = vmatprep.subr.mxu0 0.0
    %268 = vmatpush1.msra.mxu0 0.0
    %269 = vmatprep.subr.mxu0 0.0
    %270 = vmatpush1.msra.mxu0 0.0
    %271 = vmatprep.subr.mxu0 0.0
    %272 = vmatpush1.msra.mxu0 0.0
    %273 = vmatprep.subr.mxu0 0.0
    %274 = vmatpush1.msra.mxu0 0.0
    %275 = vmatprep.subr.mxu0 0.0
    %276 = vmatpush1.msra.mxu0 0.0
    %277 = vmatprep.subr.mxu0 0.0
    %278 = vmatpush1.msra.mxu0 0.0
    %279 = vmatprep.subr.mxu0 0.0
    %280 = vmatpush1.msra.mxu0 0.0
    %281 = vmatprep.subr.mxu0 0.0
    %282 = vmatpush1.msra.mxu0 0.0
    %283 = vmatprep.subr.mxu0 0.0
    %284 = vmatpush1.msra.mxu0 0.0
    %285 = vmatprep.subr.mxu0 0.0
    %286 = vmatpush1.msra.mxu0 0.0
    %287 = vmatprep.subr.mxu0 0.0
    %288 = vmatpush1.msra.mxu0 0.0
    %289 = vmatprep.subr.mxu0 0.0
    %290 = vmatpush1.msra.mxu0 0.0
    %291 = vmatprep.subr.mxu0 0.0
    %292 = vmatpush1.msra.mxu0 0.0
    %293 = vmatprep.mubr.f32.mxu0 0.0
    %294 = vmatmul.mubr.f32.gmra.mrb[0].mxu0 %v93
    %v295 = vpop.f32.mrb[0].mxu0
    %v296 = vadd.f32 0.0, %v295
    %v297 = vpop.f32.mrb[0].mxu0
    %298 = vmatprep.mubr.f32.mxu0 0.0
    %299 = vmatmul.mubr.f32.gmra.mrb[0].mxu0 %v96
    %v300 = vpop.f32.mrb[0].mxu0
    %v301 = vadd.f32 0.0, %v300
    %v302 = vpop.f32.mrb[0].mxu0
    %303 = vmatprep.mubr.f32.mxu0 0.0
    %304 = vmatmul.mubr.f32.gmra.mrb[0].mxu0 %v99
    %v305 = vpop.f32.mrb[0].mxu0
    %v306 = vadd.f32 0.0, %v305
    %v307 = vpop.f32.mrb[0].mxu0
    %308 = vmatprep.mubr.f32.mxu0 0.0
    %309 = vmatmul.mubr.f32.gmra.mrb[0].mxu0 %v102
    %v310 = vpop.f32.mrb[0].mxu0
    %v311 = vadd.f32 0.0, %v310
    %v312 = vpop.f32.mrb[0].mxu0
    %313 = vmatprep.mubr.f32.mxu0 0.0
    %314 = vmatmul.mubr.f32.gmra.mrb[0].mxu0 %v105
    %v315 = vpop.f32.mrb[0].mxu0
    %v316 = vadd.f32 0.0, %v315
    %v317 = vpop.f32.mrb[0].mxu0
    %318 = vmatprep.mubr.f32.mxu0 0.0
    %319 = vmatmul.mubr.f32.gmra.mrb[0].mxu0 %v108
    %v320 = vpop.f32.mrb[0].mxu0
    %v321 = vadd.f32 0.0, %v320
    %v322 = vpop.f32.mrb[0].mxu0
    %323 = vmatprep.mubr.f32.mxu0 0.0
    %324 = vmatmul.mubr.f32.gmra.mrb[0].mxu0 %v111
    %v325 = vpop.f32.mrb[0].mxu0
    %v326 = vadd.f32 0.0, %v325
    %v327 = vpop.f32.mrb[0].mxu0
    %328 = vmatprep.mubr.f32.mxu0 0.0
    %329 = vmatmul.mubr.f32.gmra.mrb[0].mxu0 %v114
    %v330 = vpop.f32.mrb[0].mxu0
    %v331 = vadd.f32 0.0, %v330
    %v332 = vpop.f32.mrb[0].mxu0
    %333 = vdwg.mxu0
    %334 = vst [vmem:[#allocation2] sm:$0xff] %v183
    %335 = vst [vmem:[#allocation2 + $0x8] sm:$0xff] %v185
    %336 = vst [vmem:[#allocation2 + $0x10] sm:$0xff] %v296
    %337 = vst [vmem:[#allocation2 + $0x18] sm:$0xff] %v189
    %338 = vst [vmem:[#allocation2 + $0x20] sm:$0xff] %v191
    %339 = vst [vmem:[#allocation2 + $0x28] sm:$0xff] %v301
    %340 = vst [vmem:[#allocation2 + $0x30] sm:$0xff] %v195
    %341 = vst [vmem:[#allocation2 + $0x38] sm:$0xff] %v197
    %342 = vst [vmem:[#allocation2 + $0x40] sm:$0xff] %v306
    %343 = vst [vmem:[#allocation2 + $0x48] sm:$0xff] %v201
    %344 = vst [vmem:[#allocation2 + $0x50] sm:$0xff] %v203
    %345 = vst [vmem:[#allocation2 + $0x58] sm:$0xff] %v311
    %346 = vst [vmem:[#allocation2 + $0x60] sm:$0xff] %v207
    %347 = vst [vmem:[#allocation2 + $0x68] sm:$0xff] %v209
    %348 = vst [vmem:[#allocation2 + $0x70] sm:$0xff] %v316
    %349 = vst [vmem:[#allocation2 + $0x78] sm:$0xff] %v213
    %350 = vst [vmem:[#allocation2 + $0x80] sm:$0xff] %v215
    %351 = vst [vmem:[#allocation2 + $0x88] sm:$0xff] %v321
    %352 = vst [vmem:[#allocation2 + $0x90] sm:$0xff] %v219
    %353 = vst [vmem:[#allocation2 + $0x98] sm:$0xff] %v221
    %354 = vst [vmem:[#allocation2 + $0xa0] sm:$0xff] %v326
    %355 = vst [vmem:[#allocation2 + $0xa8] sm:$0xff] %v225
    %356 = vst [vmem:[#allocation2 + $0xb0] sm:$0xff] %v227
    %357 = vst [vmem:[#allocation2 + $0xb8] sm:$0xff] %v331
    %v358 = vld [vmem:[%s1] sm:$0xff]
    %v359 = vld [vmem:[#allocation4] sm:$0xff]
    %v360 = vld [vmem:[#allocation4 + $0x8] sm:$0xff]
    %v361 = vld [vmem:[#allocation4 + $0x10] sm:$0xff]
    %v362 = vld [vmem:[#allocation4 + $0x18] sm:$0xff]
    %v363 = vld [vmem:[#allocation4 + $0x20] sm:$0xff]
    %v364 = vld [vmem:[#allocation4 + $0x28] sm:$0xff]
    %v365 = vld [vmem:[%s5] sm:$0x7]
    %v367 = vlaneseq
    %v368 = vshrl.u32 %v367, 7
    %v369 = vsub.s32 0, %v368
    %v370 = vrot.slane %v365, %v369
    %v371 = vlaneseq
    %v372 = vshrl.u32 %v371, 7
    %v373 = vsub.s32 1, %v372
    %v374 = vrot.slane %v365, %v373
    %v375 = vlaneseq
    %v376 = vshrl.u32 %v375, 7
    %v377 = vsub.s32 2, %v376
    %v378 = vrot.slane %v365, %v377
    %v383 = vsel %vm91, %v358, 0
    %385 = vmatprep.subr.mxu0 %v360
    %386 = vmatpush1.msra.mxu0 %v359
    %387 = vmatprep.subr.mxu0 %v363
    %388 = vmatpush1.msra.mxu0 %v362
    %389 = vmatprep.subr.mxu0 0.0
    %390 = vmatpush1.msra.mxu0 0.0
    %391 = vmatprep.subr.mxu0 0.0
    %392 = vmatpush1.msra.mxu0 0.0
    %393 = vmatprep.subr.mxu0 0.0
    %394 = vmatpush1.msra.mxu0 0.0
    %395 = vmatprep.subr.mxu0 0.0
    %396 = vmatpush1.msra.mxu0 0.0
    %397 = vmatprep.subr.mxu0 0.0
    %398 = vmatpush1.msra.mxu0 0.0
    %399 = vmatprep.subr.mxu0 0.0
    %400 = vmatpush1.msra.mxu0 0.0
    %401 = vmatprep.subr.mxu0 0.0
    %402 = vmatpush1.msra.mxu0 0.0
    %403 = vmatprep.subr.mxu0 0.0
    %404 = vmatpush1.msra.mxu0 0.0
    %405 = vmatprep.subr.mxu0 0.0
    %406 = vmatpush1.msra.mxu0 0.0
    %407 = vmatprep.subr.mxu0 0.0
    %408 = vmatpush1.msra.mxu0 0.0
    %409 = vmatprep.subr.mxu0 0.0
    %410 = vmatpush1.msra.mxu0 0.0
    %411 = vmatprep.subr.mxu0 0.0
    %412 = vmatpush1.msra.mxu0 0.0
    %413 = vmatprep.subr.mxu0 0.0
    %414 = vmatpush1.msra.mxu0 0.0
    %415 = vmatprep.subr.mxu0 0.0
    %416 = vmatpush1.msra.mxu0 0.0
    %417 = vmatprep.subr.mxu0 0.0
    %418 = vmatpush1.msra.mxu0 0.0
    %419 = vmatprep.subr.mxu0 0.0
    %420 = vmatpush1.msra.mxu0 0.0
    %421 = vmatprep.subr.mxu0 0.0
    %422 = vmatpush1.msra.mxu0 0.0
    %423 = vmatprep.subr.mxu0 0.0
    %424 = vmatpush1.msra.mxu0 0.0
    %425 = vmatprep.subr.mxu0 0.0
    %426 = vmatpush1.msra.mxu0 0.0
    %427 = vmatprep.subr.mxu0 0.0
    %428 = vmatpush1.msra.mxu0 0.0
    %429 = vmatprep.subr.mxu0 0.0
    %430 = vmatpush1.msra.mxu0 0.0
    %431 = vmatprep.subr.mxu0 0.0
    %432 = vmatpush1.msra.mxu0 0.0
    %433 = vmatprep.subr.mxu0 0.0
    %434 = vmatpush1.msra.mxu0 0.0
    %435 = vmatprep.subr.mxu0 0.0
    %436 = vmatpush1.msra.mxu0 0.0
    %437 = vmatprep.subr.mxu0 0.0
    %438 = vmatpush1.msra.mxu0 0.0
    %439 = vmatprep.subr.mxu0 0.0
    %440 = vmatpush1.msra.mxu0 0.0
    %441 = vmatprep.subr.mxu0 0.0
    %442 = vmatpush1.msra.mxu0 0.0
    %443 = vmatprep.subr.mxu0 0.0
    %444 = vmatpush1.msra.mxu0 0.0
    %445 = vmatprep.subr.mxu0 0.0
    %446 = vmatpush1.msra.mxu0 0.0
    %447 = vmatprep.subr.mxu0 0.0
    %448 = vmatpush1.msra.mxu0 0.0
    %449 = vmatprep.mubr.f32.mxu0 0.0
    %450 = vmatmul.mubr.f32.gmra.mrb[0].mxu0 %v383
    %v451 = vpop.f32.mrb[0].mxu0
    %v452 = vadd.f32 %v370, %v451
    %v453 = vpop.f32.mrb[0].mxu0
    %v454 = vadd.f32 %v374, %v453
    %455 = vdwg.mxu0
    %456 = vmatprep.subr.mxu0 0.0
    %457 = vmatpush1.msra.mxu0 %v361
    %458 = vmatprep.subr.mxu0 0.0
    %459 = vmatpush1.msra.mxu0 %v364
    %460 = vmatprep.subr.mxu0 0.0
    %461 = vmatpush1.msra.mxu0 0.0
    %462 = vmatprep.subr.mxu0 0.0
    %463 = vmatpush1.msra.mxu0 0.0
    %464 = vmatprep.subr.mxu0 0.0
    %465 = vmatpush1.msra.mxu0 0.0
    %466 = vmatprep.subr.mxu0 0.0
    %467 = vmatpush1.msra.mxu0 0.0
    %468 = vmatprep.subr.mxu0 0.0
    %469 = vmatpush1.msra.mxu0 0.0
    %470 = vmatprep.subr.mxu0 0.0
    %471 = vmatpush1.msra.mxu0 0.0
    %472 = vmatprep.subr.mxu0 0.0
    %473 = vmatpush1.msra.mxu0 0.0
    %474 = vmatprep.subr.mxu0 0.0
    %475 = vmatpush1.msra.mxu0 0.0
    %476 = vmatprep.subr.mxu0 0.0
    %477 = vmatpush1.msra.mxu0 0.0
    %478 = vmatprep.subr.mxu0 0.0
    %479 = vmatpush1.msra.mxu0 0.0
    %480 = vmatprep.subr.mxu0 0.0
    %481 = vmatpush1.msra.mxu0 0.0
    %482 = vmatprep.subr.mxu0 0.0
    %483 = vmatpush1.msra.mxu0 0.0
    %484 = vmatprep.subr.mxu0 0.0
    %485 = vmatpush1.msra.mxu0 0.0
    %486 = vmatprep.subr.mxu0 0.0
    %487 = vmatpush1.msra.mxu0 0.0
    %488 = vmatprep.subr.mxu0 0.0
    %489 = vmatpush1.msra.mxu0 0.0
    %490 = vmatprep.subr.mxu0 0.0
    %491 = vmatpush1.msra.mxu0 0.0
    %492 = vmatprep.subr.mxu0 0.0
    %493 = vmatpush1.msra.mxu0 0.0
    %494 = vmatprep.subr.mxu0 0.0
    %495 = vmatpush1.msra.mxu0 0.0
    %496 = vmatprep.subr.mxu0 0.0
    %497 = vmatpush1.msra.mxu0 0.0
    %498 = vmatprep.subr.mxu0 0.0
    %499 = vmatpush1.msra.mxu0 0.0
    %500 = vmatprep.subr.mxu0 0.0
    %501 = vmatpush1.msra.mxu0 0.0
    %502 = vmatprep.subr.mxu0 0.0
    %503 = vmatpush1.msra.mxu0 0.0
    %504 = vmatprep.subr.mxu0 0.0
    %505 = vmatpush1.msra.mxu0 0.0
    %506 = vmatprep.subr.mxu0 0.0
    %507 = vmatpush1.msra.mxu0 0.0
    %508 = vmatprep.subr.mxu0 0.0
    %509 = vmatpush1.msra.mxu0 0.0
    %510 = vmatprep.subr.mxu0 0.0
    %511 = vmatpush1.msra.mxu0 0.0
    %512 = vmatprep.subr.mxu0 0.0
    %513 = vmatpush1.msra.mxu0 0.0
    %514 = vmatprep.subr.mxu0 0.0
    %515 = vmatpush1.msra.mxu0 0.0
    %516 = vmatprep.subr.mxu0 0.0
    %517 = vmatpush1.msra.mxu0 0.0
    %518 = vmatprep.subr.mxu0 0.0
    %519 = vmatpush1.msra.mxu0 0.0
    %520 = vmatprep.mubr.f32.mxu0 0.0
    %521 = vmatmul.mubr.f32.gmra.mrb[0].mxu0 %v383
    %v522 = vpop.f32.mrb[0].mxu0
    %v523 = vadd.f32 %v378, %v522
    %v524 = vpop.f32.mrb[0].mxu0
    %525 = vdwg.mxu0
    %v526 = vld [vmem:[#allocation7] sm:$0xff]
    %v527 = vld [vmem:[#allocation7 + $0x8] sm:$0xff]
    %v528 = vld [vmem:[#allocation7 + $0x10] sm:$0xff]
    %v529 = vld [vmem:[#allocation7 + $0x18] sm:$0xff]
    %v530 = vld [vmem:[#allocation7 + $0x20] sm:$0xff]
    %v531 = vld [vmem:[#allocation7 + $0x28] sm:$0xff]
    %v532 = vld [vmem:[#allocation7 + $0x30] sm:$0xff]
    %v533 = vld [vmem:[#allocation7 + $0x38] sm:$0xff]
    %v534 = vld [vmem:[#allocation7 + $0x40] sm:$0xff]
    %v535 = vld [vmem:[#allocation7 + $0x48] sm:$0xff]
    %v536 = vld [vmem:[#allocation7 + $0x50] sm:$0xff]
    %v537 = vld [vmem:[#allocation7 + $0x58] sm:$0xff]
    %v538 = vld [vmem:[#allocation7 + $0x60] sm:$0xff]
    %v539 = vld [vmem:[#allocation7 + $0x68] sm:$0xff]
    %v540 = vld [vmem:[#allocation7 + $0x70] sm:$0xff]
    %v541 = vld [vmem:[#allocation7 + $0x78] sm:$0xff]
    %v542 = vld [vmem:[#allocation7 + $0x80] sm:$0xff]
    %v543 = vld [vmem:[#allocation7 + $0x88] sm:$0xff]
    %v544 = vld [vmem:[#allocation7 + $0x90] sm:$0xff]
    %v545 = vld [vmem:[#allocation7 + $0x98] sm:$0xff]
    %v546 = vld [vmem:[#allocation7 + $0xa0] sm:$0xff]
    %v547 = vld [vmem:[#allocation7 + $0xa8] sm:$0xff]
    %v548 = vld [vmem:[#allocation7 + $0xb0] sm:$0xff]
    %v549 = vld [vmem:[#allocation7 + $0xb8] sm:$0xff]
    %v550 = vld [vmem:[#allocation7 + $0xc0] sm:$0xff]
    %v551 = vld [vmem:[#allocation7 + $0xc8] sm:$0xff]
    %v552 = vld [vmem:[#allocation7 + $0xd0] sm:$0xff]
    %v553 = vld [vmem:[#allocation7 + $0xd8] sm:$0xff]
    %v554 = vld [vmem:[#allocation7 + $0xe0] sm:$0xff]
    %v555 = vld [vmem:[#allocation7 + $0xe8] sm:$0xff]
    %v556 = vld [vmem:[#allocation7 + $0xf0] sm:$0xff]
    %v557 = vld [vmem:[#allocation7 + $0xf8] sm:$0xff]
    %v558 = vld [vmem:[#allocation7 + $0x100] sm:$0xff]
    %v559 = vld [vmem:[#allocation7 + $0x108] sm:$0xff]
    %v560 = vld [vmem:[#allocation7 + $0x110] sm:$0xff]
    %v561 = vld [vmem:[#allocation7 + $0x118] sm:$0xff]
    %v562 = vld [vmem:[#allocation7 + $0x120] sm:$0xff]
    %v563 = vld [vmem:[#allocation7 + $0x128] sm:$0xff]
    %v564 = vld [vmem:[#allocation7 + $0x130] sm:$0xff]
    %v565 = vld [vmem:[#allocation7 + $0x138] sm:$0xff]
    %v566 = vld [vmem:[#allocation7 + $0x140] sm:$0xff]
    %v567 = vld [vmem:[#allocation7 + $0x148] sm:$0xff]
    %v568 = vld [vmem:[#allocation7 + $0x150] sm:$0xff]
    %v569 = vld [vmem:[#allocation7 + $0x158] sm:$0xff]
    %v570 = vld [vmem:[#allocation7 + $0x160] sm:$0xff]
    %v571 = vld [vmem:[#allocation7 + $0x168] sm:$0xff]
    %v572 = vld [vmem:[#allocation7 + $0x170] sm:$0xff]
    %v573 = vld [vmem:[#allocation7 + $0x178] sm:$0xff]
    %v574 = vld [vmem:[%s6] sm:$0x7]
    %s575 = smul.u32 0, 3
    %s576 = smul.addr %s575, 8
    %s577 = scalar_lea.vmem [#allocation2], %s576
    %v578 = vld [vmem:[%s577] sm:$0xff]
    %v579 = vld [vmem:[%s577 + $0x8] sm:$0xff]
    %v580 = vld [vmem:[%s577 + $0x10] sm:$0xff]
    %v581 = vadd.f32 %v578, %v452
    %v582 = vadd.f32 %v579, %v454
    %v583 = vadd.f32 %v580, %v523
    %v585 = vlaneseq
    %v586 = vshrl.u32 %v585, 7
    %v587 = vsub.s32 0, %v586
    %v588 = vrot.slane %v574, %v587
    %v589 = vlaneseq
    %v590 = vshrl.u32 %v589, 7
    %v591 = vsub.s32 1, %v590
    %v592 = vrot.slane %v574, %v591
    %v593 = vlaneseq
    %v594 = vshrl.u32 %v593, 7
    %v595 = vsub.s32 2, %v594
    %v596 = vrot.slane %v574, %v595
    %600 = vmatprep.subr.mxu0 %v527
    %601 = vmatpush1.msra.mxu0 %v526
    %602 = vmatprep.subr.mxu0 %v530
    %603 = vmatpush1.msra.mxu0 %v529
    %604 = vmatprep.subr.mxu0 %v533
    %605 = vmatpush1.msra.mxu0 %v532
    %606 = vmatprep.subr.mxu0 %v536
    %607 = vmatpush1.msra.mxu0 %v535
    %608 = vmatprep.subr.mxu0 %v539
    %609 = vmatpush1.msra.mxu0 %v538
    %610 = vmatprep.subr.mxu0 %v542
    %611 = vmatpush1.msra.mxu0 %v541
    %612 = vmatprep.subr.mxu0 %v545
    %613 = vmatpush1.msra.mxu0 %v544
    %614 = vmatprep.subr.mxu0 %v548
    %615 = vmatpush1.msra.mxu0 %v547
    %616 = vmatprep.subr.mxu0 %v551
    %617 = vmatpush1.msra.mxu0 %v550
    %618 = vmatprep.subr.mxu0 %v554
    %619 = vmatpush1.msra.mxu0 %v553
    %620 = vmatprep.subr.mxu0 %v557
    %621 = vmatpush1.msra.mxu0 %v556
    %622 = vmatprep.subr.mxu0 %v560
    %623 = vmatpush1.msra.mxu0 %v559
    %624 = vmatprep.subr.mxu0 %v563
    %625 = vmatpush1.msra.mxu0 %v562
    %626 = vmatprep.subr.mxu0 %v566
    %627 = vmatpush1.msra.mxu0 %v565
    %628 = vmatprep.subr.mxu0 %v569
    %629 = vmatpush1.msra.mxu0 %v568
    %630 = vmatprep.subr.mxu0 %v572
    %631 = vmatpush1.msra.mxu0 %v571
    %632 = vmatprep.subr.mxu0 0.0
    %633 = vmatpush1.msra.mxu0 0.0
    %634 = vmatprep.subr.mxu0 0.0
    %635 = vmatpush1.msra.mxu0 0.0
    %636 = vmatprep.subr.mxu0 0.0
    %637 = vmatpush1.msra.mxu0 0.0
    %638 = vmatprep.subr.mxu0 0.0
    %639 = vmatpush1.msra.mxu0 0.0
    %640 = vmatprep.subr.mxu0 0.0
    %641 = vmatpush1.msra.mxu0 0.0
    %642 = vmatprep.subr.mxu0 0.0
    %643 = vmatpush1.msra.mxu0 0.0
    %644 = vmatprep.subr.mxu0 0.0
    %645 = vmatpush1.msra.mxu0 0.0
    %646 = vmatprep.subr.mxu0 0.0
    %647 = vmatpush1.msra.mxu0 0.0
    %648 = vmatprep.subr.mxu0 0.0
    %649 = vmatpush1.msra.mxu0 0.0
    %650 = vmatprep.subr.mxu0 0.0
    %651 = vmatpush1.msra.mxu0 0.0
    %652 = vmatprep.subr.mxu0 0.0
    %653 = vmatpush1.msra.mxu0 0.0
    %654 = vmatprep.subr.mxu0 0.0
    %655 = vmatpush1.msra.mxu0 0.0
    %656 = vmatprep.subr.mxu0 0.0
    %657 = vmatpush1.msra.mxu0 0.0
    %658 = vmatprep.subr.mxu0 0.0
    %659 = vmatpush1.msra.mxu0 0.0
    %660 = vmatprep.subr.mxu0 0.0
    %661 = vmatpush1.msra.mxu0 0.0
    %662 = vmatprep.subr.mxu0 0.0
    %663 = vmatpush1.msra.mxu0 0.0
    %664 = vmatprep.mubr.f32.mxu0 0.0
    %665 = vmatmul.mubr.f32.gmra.mrb[0].mxu0 0.0
    %v666 = vpop.f32.mrb[0].mxu0
    %v667 = vadd.f32 %v588, %v666
    %v668 = vpop.f32.mrb[0].mxu0
    %v669 = vadd.f32 %v592, %v668
    %670 = vdwg.mxu0
    %671 = vmatprep.subr.mxu0 0.0
    %672 = vmatpush1.msra.mxu0 %v528
    %673 = vmatprep.subr.mxu0 0.0
    %674 = vmatpush1.msra.mxu0 %v531
    %675 = vmatprep.subr.mxu0 0.0
    %676 = vmatpush1.msra.mxu0 %v534
    %677 = vmatprep.subr.mxu0 0.0
    %678 = vmatpush1.msra.mxu0 %v537
    %679 = vmatprep.subr.mxu0 0.0
    %680 = vmatpush1.msra.mxu0 %v540
    %681 = vmatprep.subr.mxu0 0.0
    %682 = vmatpush1.msra.mxu0 %v543
    %683 = vmatprep.subr.mxu0 0.0
    %684 = vmatpush1.msra.mxu0 %v546
    %685 = vmatprep.subr.mxu0 0.0
    %686 = vmatpush1.msra.mxu0 %v549
    %687 = vmatprep.subr.mxu0 0.0
    %688 = vmatpush1.msra.mxu0 %v552
    %689 = vmatprep.subr.mxu0 0.0
    %690 = vmatpush1.msra.mxu0 %v555
    %691 = vmatprep.subr.mxu0 0.0
    %692 = vmatpush1.msra.mxu0 %v558
    %693 = vmatprep.subr.mxu0 0.0
    %694 = vmatpush1.msra.mxu0 %v561
    %695 = vmatprep.subr.mxu0 0.0
    %696 = vmatpush1.msra.mxu0 %v564
    %697 = vmatprep.subr.mxu0 0.0
    %698 = vmatpush1.msra.mxu0 %v567
    %699 = vmatprep.subr.mxu0 0.0
    %700 = vmatpush1.msra.mxu0 %v570
    %701 = vmatprep.subr.mxu0 0.0
    %702 = vmatpush1.msra.mxu0 %v573
    %703 = vmatprep.subr.mxu0 0.0
    %704 = vmatpush1.msra.mxu0 0.0
    %705 = vmatprep.subr.mxu0 0.0
    %706 = vmatpush1.msra.mxu0 0.0
    %707 = vmatprep.subr.mxu0 0.0
    %708 = vmatpush1.msra.mxu0 0.0
    %709 = vmatprep.subr.mxu0 0.0
    %710 = vmatpush1.msra.mxu0 0.0
    %711 = vmatprep.subr.mxu0 0.0
    %712 = vmatpush1.msra.mxu0 0.0
    %713 = vmatprep.subr.mxu0 0.0
    %714 = vmatpush1.msra.mxu0 0.0
    %715 = vmatprep.subr.mxu0 0.0
    %716 = vmatpush1.msra.mxu0 0.0
    %717 = vmatprep.subr.mxu0 0.0
    %718 = vmatpush1.msra.mxu0 0.0
    %719 = vmatprep.subr.mxu0 0.0
    %720 = vmatpush1.msra.mxu0 0.0
    %721 = vmatprep.subr.mxu0 0.0
    %722 = vmatpush1.msra.mxu0 0.0
    %723 = vmatprep.subr.mxu0 0.0
    %724 = vmatpush1.msra.mxu0 0.0
    %725 = vmatprep.subr.mxu0 0.0
    %726 = vmatpush1.msra.mxu0 0.0
    %727 = vmatprep.subr.mxu0 0.0
    %728 = vmatpush1.msra.mxu0 0.0
    %729 = vmatprep.subr.mxu0 0.0
    %730 = vmatpush1.msra.mxu0 0.0
    %731 = vmatprep.subr.mxu0 0.0
    %732 = vmatpush1.msra.mxu0 0.0
    %733 = vmatprep.subr.mxu0 0.0
    %734 = vmatpush1.msra.mxu0 0.0
    %735 = vmatprep.mubr.f32.mxu0 0.0
    %736 = vmatmul.mubr.f32.gmra.mrb[0].mxu0 0.0
    %v737 = vpop.f32.mrb[0].mxu0
    %v738 = vadd.f32 %v596, %v737
    %v739 = vpop.f32.mrb[0].mxu0
    %740 = vdwg.mxu0
    %v741 = vadd.f32 %v581, %v667
    %v742 = vxor.u32 %v741, 2147483648
    %v743 = vmul.f32 %v742, 1.442695
    %v744 = vpow.pop %v743
    %v745 = vadd.f32 %v744, 1.0
    %v746 = vrcp.pop %v745
    %v747 = vmul.f32 1.0, %v746
    %v748 = vadd.f32 %v582, %v669
    %v749 = vxor.u32 %v748, 2147483648
    %v750 = vmul.f32 %v749, 1.442695
    %v751 = vpow.pop %v750
    %v752 = vadd.f32 %v751, 1.0
    %v753 = vrcp.pop %v752
    %v754 = vmul.f32 1.0, %v753
    %v755 = vmul.f32 %v747, %v738
    %v756 = vadd.f32 %v583, %v755
    %v757 = vtanh.pop %v756
    %v758 = vsub.f32 1.0, %v754
    %v759 = vmul.f32 %v758, %v757
    %v760 = vmul.f32 %v754, 0.0
    %v761 = vadd.f32 %v759, %v760
    %762 = vst [vmem:[#allocation3] sm:$0xff] %v761
    %s763 = smul.u32 1, 3
    %s764 = smul.addr %s763, 8
    %s765 = scalar_lea.vmem [#allocation2], %s764
    %v766 = vld [vmem:[%s765] sm:$0xff]
    %v767 = vld [vmem:[%s765 + $0x8] sm:$0xff]
    %v768 = vld [vmem:[%s765 + $0x10] sm:$0xff]
    %v769 = vadd.f32 %v766, %v452
    %v770 = vadd.f32 %v767, %v454
    %v771 = vadd.f32 %v768, %v523
    %772 = vmatprep.subr.mxu0 %v527
    %773 = vmatpush1.msra.mxu0 %v526
    %774 = vmatprep.subr.mxu0 %v530
    %775 = vmatpush1.msra.mxu0 %v529
    %776 = vmatprep.subr.mxu0 %v533
    %777 = vmatpush1.msra.mxu0 %v532
    %778 = vmatprep.subr.mxu0 %v536
    %779 = vmatpush1.msra.mxu0 %v535
    %780 = vmatprep.subr.mxu0 %v539
    %781 = vmatpush1.msra.mxu0 %v538
    %782 = vmatprep.subr.mxu0 %v542
    %783 = vmatpush1.msra.mxu0 %v541
    %784 = vmatprep.subr.mxu0 %v545
    %785 = vmatpush1.msra.mxu0 %v544
    %786 = vmatprep.subr.mxu0 %v548
    %787 = vmatpush1.msra.mxu0 %v547
    %788 = vmatprep.subr.mxu0 %v551
    %789 = vmatpush1.msra.mxu0 %v550
    %790 = vmatprep.subr.mxu0 %v554
    %791 = vmatpush1.msra.mxu0 %v553
    %792 = vmatprep.subr.mxu0 %v557
    %793 = vmatpush1.msra.mxu0 %v556
    %794 = vmatprep.subr.mxu0 %v560
    %795 = vmatpush1.msra.mxu0 %v559
    %796 = vmatprep.subr.mxu0 %v563
    %797 = vmatpush1.msra.mxu0 %v562
    %798 = vmatprep.subr.mxu0 %v566
    %799 = vmatpush1.msra.mxu0 %v565
    %800 = vmatprep.subr.mxu0 %v569
    %801 = vmatpush1.msra.mxu0 %v568
    %802 = vmatprep.subr.mxu0 %v572
    %803 = vmatpush1.msra.mxu0 %v571
    %804 = vmatprep.subr.mxu0 0.0
    %805 = vmatpush1.msra.mxu0 0.0
    %806 = vmatprep.subr.mxu0 0.0
    %807 = vmatpush1.msra.mxu0 0.0
    %808 = vmatprep.subr.mxu0 0.0
    %809 = vmatpush1.msra.mxu0 0.0
    %810 = vmatprep.subr.mxu0 0.0
    %811 = vmatpush1.msra.mxu0 0.0
    %812 = vmatprep.subr.mxu0 0.0
    %813 = vmatpush1.msra.mxu0 0.0
    %814 = vmatprep.subr.mxu0 0.0
    %815 = vmatpush1.msra.mxu0 0.0
    %816 = vmatprep.subr.mxu0 0.0
    %817 = vmatpush1.msra.mxu0 0.0
    %818 = vmatprep.subr.mxu0 0.0
    %819 = vmatpush1.msra.mxu0 0.0
    %820 = vmatprep.subr.mxu0 0.0
    %821 = vmatpush1.msra.mxu0 0.0
    %822 = vmatprep.subr.mxu0 0.0
    %823 = vmatpush1.msra.mxu0 0.0
    %824 = vmatprep.subr.mxu0 0.0
    %825 = vmatpush1.msra.mxu0 0.0
    %826 = vmatprep.subr.mxu0 0.0
    %827 = vmatpush1.msra.mxu0 0.0
    %828 = vmatprep.subr.mxu0 0.0
    %829 = vmatpush1.msra.mxu0 0.0
    %830 = vmatprep.subr.mxu0 0.0
    %831 = vmatpush1.msra.mxu0 0.0
    %832 = vmatprep.subr.mxu0 0.0
    %833 = vmatpush1.msra.mxu0 0.0
    %834 = vmatprep.subr.mxu0 0.0
    %835 = vmatpush1.msra.mxu0 0.0
    %836 = vmatprep.mubr.f32.mxu0 0.0
    %837 = vmatmul.mubr.f32.gmra.mrb[0].mxu0 %v761
    %v838 = vpop.f32.mrb[0].mxu0
    %v839 = vadd.f32 %v588, %v838
    %v840 = vpop.f32.mrb[0].mxu0
    %v841 = vadd.f32 %v592, %v840
    %842 = vdwg.mxu0
    %843 = vmatprep.subr.mxu0 0.0
    %844 = vmatpush1.msra.mxu0 %v528
    %845 = vmatprep.subr.mxu0 0.0
    %846 = vmatpush1.msra.mxu0 %v531
    %847 = vmatprep.subr.mxu0 0.0
    %848 = vmatpush1.msra.mxu0 %v534
    %849 = vmatprep.subr.mxu0 0.0
    %850 = vmatpush1.msra.mxu0 %v537
    %851 = vmatprep.subr.mxu0 0.0
    %852 = vmatpush1.msra.mxu0 %v540
    %853 = vmatprep.subr.mxu0 0.0
    %854 = vmatpush1.msra.mxu0 %v543
    %855 = vmatprep.subr.mxu0 0.0
    %856 = vmatpush1.msra.mxu0 %v546
    %857 = vmatprep.subr.mxu0 0.0
    %858 = vmatpush1.msra.mxu0 %v549
    %859 = vmatprep.subr.mxu0 0.0
    %860 = vmatpush1.msra.mxu0 %v552
    %861 = vmatprep.subr.mxu0 0.0
    %862 = vmatpush1.msra.mxu0 %v555
    %863 = vmatprep.subr.mxu0 0.0
    %864 = vmatpush1.msra.mxu0 %v558
    %865 = vmatprep.subr.mxu0 0.0
    %866 = vmatpush1.msra.mxu0 %v561
    %867 = vmatprep.subr.mxu0 0.0
    %868 = vmatpush1.msra.mxu0 %v564
    %869 = vmatprep.subr.mxu0 0.0
    %870 = vmatpush1.msra.mxu0 %v567
    %871 = vmatprep.subr.mxu0 0.0
    %872 = vmatpush1.msra.mxu0 %v570
    %873 = vmatprep.subr.mxu0 0.0
    %874 = vmatpush1.msra.mxu0 %v573
    %875 = vmatprep.subr.mxu0 0.0
    %876 = vmatpush1.msra.mxu0 0.0
    %877 = vmatprep.subr.mxu0 0.0
    %878 = vmatpush1.msra.mxu0 0.0
    %879 = vmatprep.subr.mxu0 0.0
    %880 = vmatpush1.msra.mxu0 0.0
    %881 = vmatprep.subr.mxu0 0.0
    %882 = vmatpush1.msra.mxu0 0.0
    %883 = vmatprep.subr.mxu0 0.0
    %884 = vmatpush1.msra.mxu0 0.0
    %885 = vmatprep.subr.mxu0 0.0
    %886 = vmatpush1.msra.mxu0 0.0
    %887 = vmatprep.subr.mxu0 0.0
    %888 = vmatpush1.msra.mxu0 0.0
    %889 = vmatprep.subr.mxu0 0.0
    %890 = vmatpush1.msra.mxu0 0.0
    %891 = vmatprep.subr.mxu0 0.0
    %892 = vmatpush1.msra.mxu0 0.0
    %893 = vmatprep.subr.mxu0 0.0
    %894 = vmatpush1.msra.mxu0 0.0
    %895 = vmatprep.subr.mxu0 0.0
    %896 = vmatpush1.msra.mxu0 0.0
    %897 = vmatprep.subr.mxu0 0.0
    %898 = vmatpush1.msra.mxu0 0.0
    %899 = vmatprep.subr.mxu0 0.0
    %900 = vmatpush1.msra.mxu0 0.0
    %901 = vmatprep.subr.mxu0 0.0
    %902 = vmatpush1.msra.mxu0 0.0
    %903 = vmatprep.subr.mxu0 0.0
    %904 = vmatpush1.msra.mxu0 0.0
    %905 = vmatprep.subr.mxu0 0.0
    %906 = vmatpush1.msra.mxu0 0.0
    %907 = vmatprep.mubr.f32.mxu0 0.0
    %908 = vmatmul.mubr.f32.gmra.mrb[0].mxu0 %v761
    %v909 = vpop.f32.mrb[0].mxu0
    %v910 = vadd.f32 %v596, %v909
    %v911 = vpop.f32.mrb[0].mxu0
    %912 = vdwg.mxu0
    %v913 = vadd.f32 %v769, %v839
    %v914 = vxor.u32 %v913, 2147483648
    %v915 = vmul.f32 %v914, 1.442695
    %v916 = vpow.pop %v915
    %v917 = vadd.f32 %v916, 1.0
    %v918 = vrcp.pop %v917
    %v919 = vmul.f32 1.0, %v918
    %v920 = vadd.f32 %v770, %v841
    %v921 = vxor.u32 %v920, 2147483648
    %v922 = vmul.f32 %v921, 1.442695
    %v923 = vpow.pop %v922
    %v924 = vadd.f32 %v923, 1.0
    %v925 = vrcp.pop %v924
    %v926 = vmul.f32 1.0, %v925
    %v927 = vmul.f32 %v919, %v910
    %v928 = vadd.f32 %v771, %v927
    %v929 = vtanh.pop %v928
    %v930 = vsub.f32 1.0, %v926
    %v931 = vmul.f32 %v930, %v929
    %v932 = vmul.f32 %v926, %v761
    %v933 = vadd.f32 %v931, %v932
    %s934 = scalar_lea.vmem [#allocation3], 8
    %935 = vst [vmem:[%s934] sm:$0xff] %v933
    %s936 = smul.u32 2, 3
    %s937 = smul.addr %s936, 8
    %s938 = scalar_lea.vmem [#allocation2], %s937
    %v939 = vld [vmem:[%s938] sm:$0xff]
    %v940 = vld [vmem:[%s938 + $0x8] sm:$0xff]
    %v941 = vld [vmem:[%s938 + $0x10] sm:$0xff]
    %v942 = vadd.f32 %v939, %v452
    %v943 = vadd.f32 %v940, %v454
    %v944 = vadd.f32 %v941, %v523
    %945 = vmatprep.subr.mxu0 %v527
    %946 = vmatpush1.msra.mxu0 %v526
    %947 = vmatprep.subr.mxu0 %v530
    %948 = vmatpush1.msra.mxu0 %v529
    %949 = vmatprep.subr.mxu0 %v533
    %950 = vmatpush1.msra.mxu0 %v532
    %951 = vmatprep.subr.mxu0 %v536
    %952 = vmatpush1.msra.mxu0 %v535
    %953 = vmatprep.subr.mxu0 %v539
    %954 = vmatpush1.msra.mxu0 %v538
    %955 = vmatprep.subr.mxu0 %v542
    %956 = vmatpush1.msra.mxu0 %v541
    %957 = vmatprep.subr.mxu0 %v545
    %958 = vmatpush1.msra.mxu0 %v544
    %959 = vmatprep.subr.mxu0 %v548
    %960 = vmatpush1.msra.mxu0 %v547
    %961 = vmatprep.subr.mxu0 %v551
    %962 = vmatpush1.msra.mxu0 %v550
    %963 = vmatprep.subr.mxu0 %v554
    %964 = vmatpush1.msra.mxu0 %v553
    %965 = vmatprep.subr.mxu0 %v557
    %966 = vmatpush1.msra.mxu0 %v556
    %967 = vmatprep.subr.mxu0 %v560
    %968 = vmatpush1.msra.mxu0 %v559
    %969 = vmatprep.subr.mxu0 %v563
    %970 = vmatpush1.msra.mxu0 %v562
    %971 = vmatprep.subr.mxu0 %v566
    %972 = vmatpush1.msra.mxu0 %v565
    %973 = vmatprep.subr.mxu0 %v569
    %974 = vmatpush1.msra.mxu0 %v568
    %975 = vmatprep.subr.mxu0 %v572
    %976 = vmatpush1.msra.mxu0 %v571
    %977 = vmatprep.subr.mxu0 0.0
    %978 = vmatpush1.msra.mxu0 0.0
    %979 = vmatprep.subr.mxu0 0.0
    %980 = vmatpush1.msra.mxu0 0.0
    %981 = vmatprep.subr.mxu0 0.0
    %982 = vmatpush1.msra.mxu0 0.0
    %983 = vmatprep.subr.mxu0 0.0
    %984 = vmatpush1.msra.mxu0 0.0
    %985 = vmatprep.subr.mxu0 0.0
    %986 = vmatpush1.msra.mxu0 0.0
    %987 = vmatprep.subr.mxu0 0.0
    %988 = vmatpush1.msra.mxu0 0.0
    %989 = vmatprep.subr.mxu0 0.0
    %990 = vmatpush1.msra.mxu0 0.0
    %991 = vmatprep.subr.mxu0 0.0
    %992 = vmatpush1.msra.mxu0 0.0
    %993 = vmatprep.subr.mxu0 0.0
    %994 = vmatpush1.msra.mxu0 0.0
    %995 = vmatprep.subr.mxu0 0.0
    %996 = vmatpush1.msra.mxu0 0.0
    %997 = vmatprep.subr.mxu0 0.0
    %998 = vmatpush1.msra.mxu0 0.0
    %999 = vmatprep.subr.mxu0 0.0
    %1000 = vmatpush1.msra.mxu0 0.0
    %1001 = vmatprep.subr.mxu0 0.0
    %1002 = vmatpush1.msra.mxu0 0.0
    %1003 = vmatprep.subr.mxu0 0.0
    %1004 = vmatpush1.msra.mxu0 0.0
    %1005 = vmatprep.subr.mxu0 0.0
    %1006 = vmatpush1.msra.mxu0 0.0
    %1007 = vmatprep.subr.mxu0 0.0
    %1008 = vmatpush1.msra.mxu0 0.0
    %1009 = vmatprep.mubr.f32.mxu0 0.0
    %1010 = vmatmul.mubr.f32.gmra.mrb[0].mxu0 %v933
    %v1011 = vpop.f32.mrb[0].mxu0
    %v1012 = vadd.f32 %v588, %v1011
    %v1013 = vpop.f32.mrb[0].mxu0
    %v1014 = vadd.f32 %v592, %v1013
    %1015 = vdwg.mxu0
    %1016 = vmatprep.subr.mxu0 0.0
    %1017 = vmatpush1.msra.mxu0 %v528
    %1018 = vmatprep.subr.mxu0 0.0
    %1019 = vmatpush1.msra.mxu0 %v531
    %1020 = vmatprep.subr.mxu0 0.0
    %1021 = vmatpush1.msra.mxu0 %v534
    %1022 = vmatprep.subr.mxu0 0.0
    %1023 = vmatpush1.msra.mxu0 %v537
    %1024 = vmatprep.subr.mxu0 0.0
    %1025 = vmatpush1.msra.mxu0 %v540
    %1026 = vmatprep.subr.mxu0 0.0
    %1027 = vmatpush1.msra.mxu0 %v543
    %1028 = vmatprep.subr.mxu0 0.0
    %1029 = vmatpush1.msra.mxu0 %v546
    %1030 = vmatprep.subr.mxu0 0.0
    %1031 = vmatpush1.msra.mxu0 %v549
    %1032 = vmatprep.subr.mxu0 0.0
    %1033 = vmatpush1.msra.mxu0 %v552
    %1034 = vmatprep.subr.mxu0 0.0
    %1035 = vmatpush1.msra.mxu0 %v555
    %1036 = vmatprep.subr.mxu0 0.0
    %1037 = vmatpush1.msra.mxu0 %v558
    %1038 = vmatprep.subr.mxu0 0.0
    %1039 = vmatpush1.msra.mxu0 %v561
    %1040 = vmatprep.subr.mxu0 0.0
    %1041 = vmatpush1.msra.mxu0 %v564
    %1042 = vmatprep.subr.mxu0 0.0
    %1043 = vmatpush1.msra.mxu0 %v567
    %1044 = vmatprep.subr.mxu0 0.0
    %1045 = vmatpush1.msra.mxu0 %v570
    %1046 = vmatprep.subr.mxu0 0.0
    %1047 = vmatpush1.msra.mxu0 %v573
    %1048 = vmatprep.subr.mxu0 0.0
    %1049 = vmatpush1.msra.mxu0 0.0
    %1050 = vmatprep.subr.mxu0 0.0
    %1051 = vmatpush1.msra.mxu0 0.0
    %1052 = vmatprep.subr.mxu0 0.0
    %1053 = vmatpush1.msra.mxu0 0.0
    %1054 = vmatprep.subr.mxu0 0.0
    %1055 = vmatpush1.msra.mxu0 0.0
    %1056 = vmatprep.subr.mxu0 0.0
    %1057 = vmatpush1.msra.mxu0 0.0
    %1058 = vmatprep.subr.mxu0 0.0
    %1059 = vmatpush1.msra.mxu0 0.0
    %1060 = vmatprep.subr.mxu0 0.0
    %1061 = vmatpush1.msra.mxu0 0.0
    %1062 = vmatprep.subr.mxu0 0.0
    %1063 = vmatpush1.msra.mxu0 0.0
    %1064 = vmatprep.subr.mxu0 0.0
    %1065 = vmatpush1.msra.mxu0 0.0
    %1066 = vmatprep.subr.mxu0 0.0
    %1067 = vmatpush1.msra.mxu0 0.0
    %1068 = vmatprep.subr.mxu0 0.0
    %1069 = vmatpush1.msra.mxu0 0.0
    %1070 = vmatprep.subr.mxu0 0.0
    %1071 = vmatpush1.msra.mxu0 0.0
    %1072 = vmatprep.subr.mxu0 0.0
    %1073 = vmatpush1.msra.mxu0 0.0
    %1074 = vmatprep.subr.mxu0 0.0
    %1075 = vmatpush1.msra.mxu0 0.0
    %1076 = vmatprep.subr.mxu0 0.0
    %1077 = vmatpush1.msra.mxu0 0.0
    %1078 = vmatprep.subr.mxu0 0.0
    %1079 = vmatpush1.msra.mxu0 0.0
    %1080 = vmatprep.mubr.f32.mxu0 0.0
    %1081 = vmatmul.mubr.f32.gmra.mrb[0].mxu0 %v933
    %v1082 = vpop.f32.mrb[0].mxu0
    %v1083 = vadd.f32 %v596, %v1082
    %v1084 = vpop.f32.mrb[0].mxu0
    %1085 = vdwg.mxu0
    %v1086 = vadd.f32 %v942, %v1012
    %v1087 = vxor.u32 %v1086, 2147483648
    %v1088 = vmul.f32 %v1087, 1.442695
    %v1089 = vpow.pop %v1088
    %v1090 = vadd.f32 %v1089, 1.0
    %v1091 = vrcp.pop %v1090
    %v1092 = vmul.f32 1.0, %v1091
    %v1093 = vadd.f32 %v943, %v1014
    %v1094 = vxor.u32 %v1093, 2147483648
    %v1095 = vmul.f32 %v1094, 1.442695
    %v1096 = vpow.pop %v1095
    %v1097 = vadd.f32 %v1096, 1.0
    %v1098 = vrcp.pop %v1097
    %v1099 = vmul.f32 1.0, %v1098
    %v1100 = vmul.f32 %v1092, %v1083
    %v1101 = vadd.f32 %v944, %v1100
    %v1102 = vtanh.pop %v1101
    %v1103 = vsub.f32 1.0, %v1099
    %v1104 = vmul.f32 %v1103, %v1102
    %v1105 = vmul.f32 %v1099, %v933
    %v1106 = vadd.f32 %v1104, %v1105
    %s1107 = scalar_lea.vmem [#allocation3], 16
    %1108 = vst [vmem:[%s1107] sm:$0xff] %v1106
    %s1109 = smul.u32 3, 3
    %s1110 = smul.addr %s1109, 8
    %s1111 = scalar_lea.vmem [#allocation2], %s1110
    %v1112 = vld [vmem:[%s1111] sm:$0xff]
    %v1113 = vld [vmem:[%s1111 + $0x8] sm:$0xff]
    %v1114 = vld [vmem:[%s1111 + $0x10] sm:$0xff]
    %v1115 = vadd.f32 %v1112, %v452
    %v1116 = vadd.f32 %v1113, %v454
    %v1117 = vadd.f32 %v1114, %v523
    %1118 = vmatprep.subr.mxu0 %v527
    %1119 = vmatpush1.msra.mxu0 %v526
    %1120 = vmatprep.subr.mxu0 %v530
    %1121 = vmatpush1.msra.mxu0 %v529
    %1122 = vmatprep.subr.mxu0 %v533
    %1123 = vmatpush1.msra.mxu0 %v532
    %1124 = vmatprep.subr.mxu0 %v536
    %1125 = vmatpush1.msra.mxu0 %v535
    %1126 = vmatprep.subr.mxu0 %v539
    %1127 = vmatpush1.msra.mxu0 %v538
    %1128 = vmatprep.subr.mxu0 %v542
    %1129 = vmatpush1.msra.mxu0 %v541
    %1130 = vmatprep.subr.mxu0 %v545
    %1131 = vmatpush1.msra.mxu0 %v544
    %1132 = vmatprep.subr.mxu0 %v548
    %1133 = vmatpush1.msra.mxu0 %v547
    %1134 = vmatprep.subr.mxu0 %v551
    %1135 = vmatpush1.msra.mxu0 %v550
    %1136 = vmatprep.subr.mxu0 %v554
    %1137 = vmatpush1.msra.mxu0 %v553
    %1138 = vmatprep.subr.mxu0 %v557
    %1139 = vmatpush1.msra.mxu0 %v556
    %1140 = vmatprep.subr.mxu0 %v560
    %1141 = vmatpush1.msra.mxu0 %v559
    %1142 = vmatprep.subr.mxu0 %v563
    %1143 = vmatpush1.msra.mxu0 %v562
    %1144 = vmatprep.subr.mxu0 %v566
    %1145 = vmatpush1.msra.mxu0 %v565
    %1146 = vmatprep.subr.mxu0 %v569
    %1147 = vmatpush1.msra.mxu0 %v568
    %1148 = vmatprep.subr.mxu0 %v572
    %1149 = vmatpush1.msra.mxu0 %v571
    %1150 = vmatprep.subr.mxu0 0.0
    %1151 = vmatpush1.msra.mxu0 0.0
    %1152 = vmatprep.subr.mxu0 0.0
    %1153 = vmatpush1.msra.mxu0 0.0
    %1154 = vmatprep.subr.mxu0 0.0
    %1155 = vmatpush1.msra.mxu0 0.0
    %1156 = vmatprep.subr.mxu0 0.0
    %1157 = vmatpush1.msra.mxu0 0.0
    %1158 = vmatprep.subr.mxu0 0.0
    %1159 = vmatpush1.msra.mxu0 0.0
    %1160 = vmatprep.subr.mxu0 0.0
    %1161 = vmatpush1.msra.mxu0 0.0
    %1162 = vmatprep.subr.mxu0 0.0
    %1163 = vmatpush1.msra.mxu0 0.0
    %1164 = vmatprep.subr.mxu0 0.0
    %1165 = vmatpush1.msra.mxu0 0.0
    %1166 = vmatprep.subr.mxu0 0.0
    %1167 = vmatpush1.msra.mxu0 0.0
    %1168 = vmatprep.subr.mxu0 0.0
    %1169 = vmatpush1.msra.mxu0 0.0
    %1170 = vmatprep.subr.mxu0 0.0
    %1171 = vmatpush1.msra.mxu0 0.0
    %1172 = vmatprep.subr.mxu0 0.0
    %1173 = vmatpush1.msra.mxu0 0.0
    %1174 = vmatprep.subr.mxu0 0.0
    %1175 = vmatpush1.msra.mxu0 0.0
    %1176 = vmatprep.subr.mxu0 0.0
    %1177 = vmatpush1.msra.mxu0 0.0
    %1178 = vmatprep.subr.mxu0 0.0
    %1179 = vmatpush1.msra.mxu0 0.0
    %1180 = vmatprep.subr.mxu0 0.0
    %1181 = vmatpush1.msra.mxu0 0.0
    %1182 = vmatprep.mubr.f32.mxu0 0.0
    %1183 = vmatmul.mubr.f32.gmra.mrb[0].mxu0 %v1106
    %v1184 = vpop.f32.mrb[0].mxu0
    %v1185 = vadd.f32 %v588, %v1184
    %v1186 = vpop.f32.mrb[0].mxu0
    %v1187 = vadd.f32 %v592, %v1186
    %1188 = vdwg.mxu0
    %1189 = vmatprep.subr.mxu0 0.0
    %1190 = vmatpush1.msra.mxu0 %v528
    %1191 = vmatprep.subr.mxu0 0.0
    %1192 = vmatpush1.msra.mxu0 %v531
    %1193 = vmatprep.subr.mxu0 0.0
    %1194 = vmatpush1.msra.mxu0 %v534
    %1195 = vmatprep.subr.mxu0 0.0
    %1196 = vmatpush1.msra.mxu0 %v537
    %1197 = vmatprep.subr.mxu0 0.0
    %1198 = vmatpush1.msra.mxu0 %v540
    %1199 = vmatprep.subr.mxu0 0.0
    %1200 = vmatpush1.msra.mxu0 %v543
    %1201 = vmatprep.subr.mxu0 0.0
    %1202 = vmatpush1.msra.mxu0 %v546
    %1203 = vmatprep.subr.mxu0 0.0
    %1204 = vmatpush1.msra.mxu0 %v549
    %1205 = vmatprep.subr.mxu0 0.0
    %1206 = vmatpush1.msra.mxu0 %v552
    %1207 = vmatprep.subr.mxu0 0.0
    %1208 = vmatpush1.msra.mxu0 %v555
    %1209 = vmatprep.subr.mxu0 0.0
    %1210 = vmatpush1.msra.mxu0 %v558
    %1211 = vmatprep.subr.mxu0 0.0
    %1212 = vmatpush1.msra.mxu0 %v561
    %1213 = vmatprep.subr.mxu0 0.0
    %1214 = vmatpush1.msra.mxu0 %v564
    %1215 = vmatprep.subr.mxu0 0.0
    %1216 = vmatpush1.msra.mxu0 %v567
    %1217 = vmatprep.subr.mxu0 0.0
    %1218 = vmatpush1.msra.mxu0 %v570
    %1219 = vmatprep.subr.mxu0 0.0
    %1220 = vmatpush1.msra.mxu0 %v573
    %1221 = vmatprep.subr.mxu0 0.0
    %1222 = vmatpush1.msra.mxu0 0.0
    %1223 = vmatprep.subr.mxu0 0.0
    %1224 = vmatpush1.msra.mxu0 0.0
    %1225 = vmatprep.subr.mxu0 0.0
    %1226 = vmatpush1.msra.mxu0 0.0
    %1227 = vmatprep.subr.mxu0 0.0
    %1228 = vmatpush1.msra.mxu0 0.0
    %1229 = vmatprep.subr.mxu0 0.0
    %1230 = vmatpush1.msra.mxu0 0.0
    %1231 = vmatprep.subr.mxu0 0.0
    %1232 = vmatpush1.msra.mxu0 0.0
    %1233 = vmatprep.subr.mxu0 0.0
    %1234 = vmatpush1.msra.mxu0 0.0
    %1235 = vmatprep.subr.mxu0 0.0
    %1236 = vmatpush1.msra.mxu0 0.0
    %1237 = vmatprep.subr.mxu0 0.0
    %1238 = vmatpush1.msra.mxu0 0.0
    %1239 = vmatprep.subr.mxu0 0.0
    %1240 = vmatpush1.msra.mxu0 0.0
    %1241 = vmatprep.subr.mxu0 0.0
    %1242 = vmatpush1.msra.mxu0 0.0
    %1243 = vmatprep.subr.mxu0 0.0
    %1244 = vmatpush1.msra.mxu0 0.0
    %1245 = vmatprep.subr.mxu0 0.0
    %1246 = vmatpush1.msra.mxu0 0.0
    %1247 = vmatprep.subr.mxu0 0.0
    %1248 = vmatpush1.msra.mxu0 0.0
    %1249 = vmatprep.subr.mxu0 0.0
    %1250 = vmatpush1.msra.mxu0 0.0
    %1251 = vmatprep.subr.mxu0 0.0
    %1252 = vmatpush1.msra.mxu0 0.0
    %1253 = vmatprep.mubr.f32.mxu0 0.0
    %1254 = vmatmul.mubr.f32.gmra.mrb[0].mxu0 %v1106
    %v1255 = vpop.f32.mrb[0].mxu0
    %v1256 = vadd.f32 %v596, %v1255
    %v1257 = vpop.f32.mrb[0].mxu0
    %1258 = vdwg.mxu0
    %v1259 = vadd.f32 %v1115, %v1185
    %v1260 = vxor.u32 %v1259, 2147483648
    %v1261 = vmul.f32 %v1260, 1.442695
    %v1262 = vpow.pop %v1261
    %v1263 = vadd.f32 %v1262, 1.0
    %v1264 = vrcp.pop %v1263
    %v1265 = vmul.f32 1.0, %v1264
    %v1266 = vadd.f32 %v1116, %v1187
    %v1267 = vxor.u32 %v1266, 2147483648
    %v1268 = vmul.f32 %v1267, 1.442695
    %v1269 = vpow.pop %v1268
    %v1270 = vadd.f32 %v1269, 1.0
    %v1271 = vrcp.pop %v1270
    %v1272 = vmul.f32 1.0, %v1271
    %v1273 = vmul.f32 %v1265, %v1256
    %v1274 = vadd.f32 %v1117, %v1273
    %v1275 = vtanh.pop %v1274
    %v1276 = vsub.f32 1.0, %v1272
    %v1277 = vmul.f32 %v1276, %v1275
    %v1278 = vmul.f32 %v1272, %v1106
    %v1279 = vadd.f32 %v1277, %v1278
    %s1280 = scalar_lea.vmem [#allocation3], 24
    %1281 = vst [vmem:[%s1280] sm:$0xff] %v1279
    %s1282 = smul.u32 4, 3
    %s1283 = smul.addr %s1282, 8
    %s1284 = scalar_lea.vmem [#allocation2], %s1283
    %v1285 = vld [vmem:[%s1284] sm:$0xff]
    %v1286 = vld [vmem:[%s1284 + $0x8] sm:$0xff]
    %v1287 = vld [vmem:[%s1284 + $0x10] sm:$0xff]
    %v1288 = vadd.f32 %v1285, %v452
    %v1289 = vadd.f32 %v1286, %v454
    %v1290 = vadd.f32 %v1287, %v523
    %1291 = vmatprep.subr.mxu0 %v527
    %1292 = vmatpush1.msra.mxu0 %v526
    %1293 = vmatprep.subr.mxu0 %v530
    %1294 = vmatpush1.msra.mxu0 %v529
    %1295 = vmatprep.subr.mxu0 %v533
    %1296 = vmatpush1.msra.mxu0 %v532
    %1297 = vmatprep.subr.mxu0 %v536
    %1298 = vmatpush1.msra.mxu0 %v535
    %1299 = vmatprep.subr.mxu0 %v539
    %1300 = vmatpush1.msra.mxu0 %v538
    %1301 = vmatprep.subr.mxu0 %v542
    %1302 = vmatpush1.msra.mxu0 %v541
    %1303 = vmatprep.subr.mxu0 %v545
    %1304 = vmatpush1.msra.mxu0 %v544
    %1305 = vmatprep.subr.mxu0 %v548
    %1306 = vmatpush1.msra.mxu0 %v547
    %1307 = vmatprep.subr.mxu0 %v551
    %1308 = vmatpush1.msra.mxu0 %v550
    %1309 = vmatprep.subr.mxu0 %v554
    %1310 = vmatpush1.msra.mxu0 %v553
    %1311 = vmatprep.subr.mxu0 %v557
    %1312 = vmatpush1.msra.mxu0 %v556
    %1313 = vmatprep.subr.mxu0 %v560
    %1314 = vmatpush1.msra.mxu0 %v559
    %1315 = vmatprep.subr.mxu0 %v563
    %1316 = vmatpush1.msra.mxu0 %v562
    %1317 = vmatprep.subr.mxu0 %v566
    %1318 = vmatpush1.msra.mxu0 %v565
    %1319 = vmatprep.subr.mxu0 %v569
    %1320 = vmatpush1.msra.mxu0 %v568
    %1321 = vmatprep.subr.mxu0 %v572
    %1322 = vmatpush1.msra.mxu0 %v571
    %1323 = vmatprep.subr.mxu0 0.0
    %1324 = vmatpush1.msra.mxu0 0.0
    %1325 = vmatprep.subr.mxu0 0.0
    %1326 = vmatpush1.msra.mxu0 0.0
    %1327 = vmatprep.subr.mxu0 0.0
    %1328 = vmatpush1.msra.mxu0 0.0
    %1329 = vmatprep.subr.mxu0 0.0
    %1330 = vmatpush1.msra.mxu0 0.0
    %1331 = vmatprep.subr.mxu0 0.0
    %1332 = vmatpush1.msra.mxu0 0.0
    %1333 = vmatprep.subr.mxu0 0.0
    %1334 = vmatpush1.msra.mxu0 0.0
    %1335 = vmatprep.subr.mxu0 0.0
    %1336 = vmatpush1.msra.mxu0 0.0
    %1337 = vmatprep.subr.mxu0 0.0
    %1338 = vmatpush1.msra.mxu0 0.0
    %1339 = vmatprep.subr.mxu0 0.0
    %1340 = vmatpush1.msra.mxu0 0.0
    %1341 = vmatprep.subr.mxu0 0.0
    %1342 = vmatpush1.msra.mxu0 0.0
    %1343 = vmatprep.subr.mxu0 0.0
    %1344 = vmatpush1.msra.mxu0 0.0
    %1345 = vmatprep.subr.mxu0 0.0
    %1346 = vmatpush1.msra.mxu0 0.0
    %1347 = vmatprep.subr.mxu0 0.0
    %1348 = vmatpush1.msra.mxu0 0.0
    %1349 = vmatprep.subr.mxu0 0.0
    %1350 = vmatpush1.msra.mxu0 0.0
    %1351 = vmatprep.subr.mxu0 0.0
    %1352 = vmatpush1.msra.mxu0 0.0
    %1353 = vmatprep.subr.mxu0 0.0
    %1354 = vmatpush1.msra.mxu0 0.0
    %1355 = vmatprep.mubr.f32.mxu0 0.0
    %1356 = vmatmul.mubr.f32.gmra.mrb[0].mxu0 %v1279
    %v1357 = vpop.f32.mrb[0].mxu0
    %v1358 = vadd.f32 %v588, %v1357
    %v1359 = vpop.f32.mrb[0].mxu0
    %v1360 = vadd.f32 %v592, %v1359
    %1361 = vdwg.mxu0
    %1362 = vmatprep.subr.mxu0 0.0
    %1363 = vmatpush1.msra.mxu0 %v528
    %1364 = vmatprep.subr.mxu0 0.0
    %1365 = vmatpush1.msra.mxu0 %v531
    %1366 = vmatprep.subr.mxu0 0.0
    %1367 = vmatpush1.msra.mxu0 %v534
    %1368 = vmatprep.subr.mxu0 0.0
    %1369 = vmatpush1.msra.mxu0 %v537
    %1370 = vmatprep.subr.mxu0 0.0
    %1371 = vmatpush1.msra.mxu0 %v540
    %1372 = vmatprep.subr.mxu0 0.0
    %1373 = vmatpush1.msra.mxu0 %v543
    %1374 = vmatprep.subr.mxu0 0.0
    %1375 = vmatpush1.msra.mxu0 %v546
    %1376 = vmatprep.subr.mxu0 0.0
    %1377 = vmatpush1.msra.mxu0 %v549
    %1378 = vmatprep.subr.mxu0 0.0
    %1379 = vmatpush1.msra.mxu0 %v552
    %1380 = vmatprep.subr.mxu0 0.0
    %1381 = vmatpush1.msra.mxu0 %v555
    %1382 = vmatprep.subr.mxu0 0.0
    %1383 = vmatpush1.msra.mxu0 %v558
    %1384 = vmatprep.subr.mxu0 0.0
    %1385 = vmatpush1.msra.mxu0 %v561
    %1386 = vmatprep.subr.mxu0 0.0
    %1387 = vmatpush1.msra.mxu0 %v564
    %1388 = vmatprep.subr.mxu0 0.0
    %1389 = vmatpush1.msra.mxu0 %v567
    %1390 = vmatprep.subr.mxu0 0.0
    %1391 = vmatpush1.msra.mxu0 %v570
    %1392 = vmatprep.subr.mxu0 0.0
    %1393 = vmatpush1.msra.mxu0 %v573
    %1394 = vmatprep.subr.mxu0 0.0
    %1395 = vmatpush1.msra.mxu0 0.0
    %1396 = vmatprep.subr.mxu0 0.0
    %1397 = vmatpush1.msra.mxu0 0.0
    %1398 = vmatprep.subr.mxu0 0.0
    %1399 = vmatpush1.msra.mxu0 0.0
    %1400 = vmatprep.subr.mxu0 0.0
    %1401 = vmatpush1.msra.mxu0 0.0
    %1402 = vmatprep.subr.mxu0 0.0
    %1403 = vmatpush1.msra.mxu0 0.0
    %1404 = vmatprep.subr.mxu0 0.0
    %1405 = vmatpush1.msra.mxu0 0.0
    %1406 = vmatprep.subr.mxu0 0.0
    %1407 = vmatpush1.msra.mxu0 0.0
    %1408 = vmatprep.subr.mxu0 0.0
    %1409 = vmatpush1.msra.mxu0 0.0
    %1410 = vmatprep.subr.mxu0 0.0
    %1411 = vmatpush1.msra.mxu0 0.0
    %1412 = vmatprep.subr.mxu0 0.0
    %1413 = vmatpush1.msra.mxu0 0.0
    %1414 = vmatprep.subr.mxu0 0.0
    %1415 = vmatpush1.msra.mxu0 0.0
    %1416 = vmatprep.subr.mxu0 0.0
    %1417 = vmatpush1.msra.mxu0 0.0
    %1418 = vmatprep.subr.mxu0 0.0
    %1419 = vmatpush1.msra.mxu0 0.0
    %1420 = vmatprep.subr.mxu0 0.0
    %1421 = vmatpush1.msra.mxu0 0.0
    %1422 = vmatprep.subr.mxu0 0.0
    %1423 = vmatpush1.msra.mxu0 0.0
    %1424 = vmatprep.subr.mxu0 0.0
    %1425 = vmatpush1.msra.mxu0 0.0
    %1426 = vmatprep.mubr.f32.mxu0 0.0
    %1427 = vmatmul.mubr.f32.gmra.mrb[0].mxu0 %v1279
    %v1428 = vpop.f32.mrb[0].mxu0
    %v1429 = vadd.f32 %v596, %v1428
    %v1430 = vpop.f32.mrb[0].mxu0
    %1431 = vdwg.mxu0
    %v1432 = vadd.f32 %v1288, %v1358
    %v1433 = vxor.u32 %v1432, 2147483648
    %v1434 = vmul.f32 %v1433, 1.442695
    %v1435 = vpow.pop %v1434
    %v1436 = vadd.f32 %v1435, 1.0
    %v1437 = vrcp.pop %v1436
    %v1438 = vmul.f32 1.0, %v1437
    %v1439 = vadd.f32 %v1289, %v1360
    %v1440 = vxor.u32 %v1439, 2147483648
    %v1441 = vmul.f32 %v1440, 1.442695
    %v1442 = vpow.pop %v1441
    %v1443 = vadd.f32 %v1442, 1.0
    %v1444 = vrcp.pop %v1443
    %v1445 = vmul.f32 1.0, %v1444
    %v1446 = vmul.f32 %v1438, %v1429
    %v1447 = vadd.f32 %v1290, %v1446
    %v1448 = vtanh.pop %v1447
    %v1449 = vsub.f32 1.0, %v1445
    %v1450 = vmul.f32 %v1449, %v1448
    %v1451 = vmul.f32 %v1445, %v1279
    %v1452 = vadd.f32 %v1450, %v1451
    %s1453 = scalar_lea.vmem [#allocation3], 32
    %1454 = vst [vmem:[%s1453] sm:$0xff] %v1452
    %s1455 = smul.u32 5, 3
    %s1456 = smul.addr %s1455, 8
    %s1457 = scalar_lea.vmem [#allocation2], %s1456
    %v1458 = vld [vmem:[%s1457] sm:$0xff]
    %v1459 = vld [vmem:[%s1457 + $0x8] sm:$0xff]
    %v1460 = vld [vmem:[%s1457 + $0x10] sm:$0xff]
    %v1461 = vadd.f32 %v1458, %v452
    %v1462 = vadd.f32 %v1459, %v454
    %v1463 = vadd.f32 %v1460, %v523
    %1464 = vmatprep.subr.mxu0 %v527
    %1465 = vmatpush1.msra.mxu0 %v526
    %1466 = vmatprep.subr.mxu0 %v530
    %1467 = vmatpush1.msra.mxu0 %v529
    %1468 = vmatprep.subr.mxu0 %v533
    %1469 = vmatpush1.msra.mxu0 %v532
    %1470 = vmatprep.subr.mxu0 %v536
    %1471 = vmatpush1.msra.mxu0 %v535
    %1472 = vmatprep.subr.mxu0 %v539
    %1473 = vmatpush1.msra.mxu0 %v538
    %1474 = vmatprep.subr.mxu0 %v542
    %1475 = vmatpush1.msra.mxu0 %v541
    %1476 = vmatprep.subr.mxu0 %v545
    %1477 = vmatpush1.msra.mxu0 %v544
    %1478 = vmatprep.subr.mxu0 %v548
    %1479 = vmatpush1.msra.mxu0 %v547
    %1480 = vmatprep.subr.mxu0 %v551
    %1481 = vmatpush1.msra.mxu0 %v550
    %1482 = vmatprep.subr.mxu0 %v554
    %1483 = vmatpush1.msra.mxu0 %v553
    %1484 = vmatprep.subr.mxu0 %v557
    %1485 = vmatpush1.msra.mxu0 %v556
    %1486 = vmatprep.subr.mxu0 %v560
    %1487 = vmatpush1.msra.mxu0 %v559
    %1488 = vmatprep.subr.mxu0 %v563
    %1489 = vmatpush1.msra.mxu0 %v562
    %1490 = vmatprep.subr.mxu0 %v566
    %1491 = vmatpush1.msra.mxu0 %v565
    %1492 = vmatprep.subr.mxu0 %v569
    %1493 = vmatpush1.msra.mxu0 %v568
    %1494 = vmatprep.subr.mxu0 %v572
    %1495 = vmatpush1.msra.mxu0 %v571
    %1496 = vmatprep.subr.mxu0 0.0
    %1497 = vmatpush1.msra.mxu0 0.0
    %1498 = vmatprep.subr.mxu0 0.0
    %1499 = vmatpush1.msra.mxu0 0.0
    %1500 = vmatprep.subr.mxu0 0.0
    %1501 = vmatpush1.msra.mxu0 0.0
    %1502 = vmatprep.subr.mxu0 0.0
    %1503 = vmatpush1.msra.mxu0 0.0
    %1504 = vmatprep.subr.mxu0 0.0
    %1505 = vmatpush1.msra.mxu0 0.0
    %1506 = vmatprep.subr.mxu0 0.0
    %1507 = vmatpush1.msra.mxu0 0.0
    %1508 = vmatprep.subr.mxu0 0.0
    %1509 = vmatpush1.msra.mxu0 0.0
    %1510 = vmatprep.subr.mxu0 0.0
    %1511 = vmatpush1.msra.mxu0 0.0
    %1512 = vmatprep.subr.mxu0 0.0
    %1513 = vmatpush1.msra.mxu0 0.0
    %1514 = vmatprep.subr.mxu0 0.0
    %1515 = vmatpush1.msra.mxu0 0.0
    %1516 = vmatprep.subr.mxu0 0.0
    %1517 = vmatpush1.msra.mxu0 0.0
    %1518 = vmatprep.subr.mxu0 0.0
    %1519 = vmatpush1.msra.mxu0 0.0
    %1520 = vmatprep.subr.mxu0 0.0
    %1521 = vmatpush1.msra.mxu0 0.0
    %1522 = vmatprep.subr.mxu0 0.0
    %1523 = vmatpush1.msra.mxu0 0.0
    %1524 = vmatprep.subr.mxu0 0.0
    %1525 = vmatpush1.msra.mxu0 0.0
    %1526 = vmatprep.subr.mxu0 0.0
    %1527 = vmatpush1.msra.mxu0 0.0
    %1528 = vmatprep.mubr.f32.mxu0 0.0
    %1529 = vmatmul.mubr.f32.gmra.mrb[0].mxu0 %v1452
    %v1530 = vpop.f32.mrb[0].mxu0
    %v1531 = vadd.f32 %v588, %v1530
    %v1532 = vpop.f32.mrb[0].mxu0
    %v1533 = vadd.f32 %v592, %v1532
    %1534 = vdwg.mxu0
    %1535 = vmatprep.subr.mxu0 0.0
    %1536 = vmatpush1.msra.mxu0 %v528
    %1537 = vmatprep.subr.mxu0 0.0
    %1538 = vmatpush1.msra.mxu0 %v531
    %1539 = vmatprep.subr.mxu0 0.0
    %1540 = vmatpush1.msra.mxu0 %v534
    %1541 = vmatprep.subr.mxu0 0.0
    %1542 = vmatpush1.msra.mxu0 %v537
    %1543 = vmatprep.subr.mxu0 0.0
    %1544 = vmatpush1.msra.mxu0 %v540
    %1545 = vmatprep.subr.mxu0 0.0
    %1546 = vmatpush1.msra.mxu0 %v543
    %1547 = vmatprep.subr.mxu0 0.0
    %1548 = vmatpush1.msra.mxu0 %v546
    %1549 = vmatprep.subr.mxu0 0.0
    %1550 = vmatpush1.msra.mxu0 %v549
    %1551 = vmatprep.subr.mxu0 0.0
    %1552 = vmatpush1.msra.mxu0 %v552
    %1553 = vmatprep.subr.mxu0 0.0
    %1554 = vmatpush1.msra.mxu0 %v555
    %1555 = vmatprep.subr.mxu0 0.0
    %1556 = vmatpush1.msra.mxu0 %v558
    %1557 = vmatprep.subr.mxu0 0.0
    %1558 = vmatpush1.msra.mxu0 %v561
    %1559 = vmatprep.subr.mxu0 0.0
    %1560 = vmatpush1.msra.mxu0 %v564
    %1561 = vmatprep.subr.mxu0 0.0
    %1562 = vmatpush1.msra.mxu0 %v567
    %1563 = vmatprep.subr.mxu0 0.0
    %1564 = vmatpush1.msra.mxu0 %v570
    %1565 = vmatprep.subr.mxu0 0.0
    %1566 = vmatpush1.msra.mxu0 %v573
    %1567 = vmatprep.subr.mxu0 0.0
    %1568 = vmatpush1.msra.mxu0 0.0
    %1569 = vmatprep.subr.mxu0 0.0
    %1570 = vmatpush1.msra.mxu0 0.0
    %1571 = vmatprep.subr.mxu0 0.0
    %1572 = vmatpush1.msra.mxu0 0.0
    %1573 = vmatprep.subr.mxu0 0.0
    %1574 = vmatpush1.msra.mxu0 0.0
    %1575 = vmatprep.subr.mxu0 0.0
    %1576 = vmatpush1.msra.mxu0 0.0
    %1577 = vmatprep.subr.mxu0 0.0
    %1578 = vmatpush1.msra.mxu0 0.0
    %1579 = vmatprep.subr.mxu0 0.0
    %1580 = vmatpush1.msra.mxu0 0.0
    %1581 = vmatprep.subr.mxu0 0.0
    %1582 = vmatpush1.msra.mxu0 0.0
    %1583 = vmatprep.subr.mxu0 0.0
    %1584 = vmatpush1.msra.mxu0 0.0
    %1585 = vmatprep.subr.mxu0 0.0
    %1586 = vmatpush1.msra.mxu0 0.0
    %1587 = vmatprep.subr.mxu0 0.0
    %1588 = vmatpush1.msra.mxu0 0.0
    %1589 = vmatprep.subr.mxu0 0.0
    %1590 = vmatpush1.msra.mxu0 0.0
    %1591 = vmatprep.subr.mxu0 0.0
    %1592 = vmatpush1.msra.mxu0 0.0
    %1593 = vmatprep.subr.mxu0 0.0
    %1594 = vmatpush1.msra.mxu0 0.0
    %1595 = vmatprep.subr.mxu0 0.0
    %1596 = vmatpush1.msra.mxu0 0.0
    %1597 = vmatprep.subr.mxu0 0.0
    %1598 = vmatpush1.msra.mxu0 0.0
    %1599 = vmatprep.mubr.f32.mxu0 0.0
    %1600 = vmatmul.mubr.f32.gmra.mrb[0].mxu0 %v1452
    %v1601 = vpop.f32.mrb[0].mxu0
    %v1602 = vadd.f32 %v596, %v1601
    %v1603 = vpop.f32.mrb[0].mxu0
    %1604 = vdwg.mxu0
    %v1605 = vadd.f32 %v1461, %v1531
    %v1606 = vxor.u32 %v1605, 2147483648
    %v1607 = vmul.f32 %v1606, 1.442695
    %v1608 = vpow.pop %v1607
    %v1609 = vadd.f32 %v1608, 1.0
    %v1610 = vrcp.pop %v1609
    %v1611 = vmul.f32 1.0, %v1610
    %v1612 = vadd.f32 %v1462, %v1533
    %v1613 = vxor.u32 %v1612, 2147483648
    %v1614 = vmul.f32 %v1613, 1.442695
    %v1615 = vpow.pop %v1614
    %v1616 = vadd.f32 %v1615, 1.0
    %v1617 = vrcp.pop %v1616
    %v1618 = vmul.f32 1.0, %v1617
    %v1619 = vmul.f32 %v1611, %v1602
    %v1620 = vadd.f32 %v1463, %v1619
    %v1621 = vtanh.pop %v1620
    %v1622 = vsub.f32 1.0, %v1618
    %v1623 = vmul.f32 %v1622, %v1621
    %v1624 = vmul.f32 %v1618, %v1452
    %v1625 = vadd.f32 %v1623, %v1624
    %s1626 = scalar_lea.vmem [#allocation3], 40
    %1627 = vst [vmem:[%s1626] sm:$0xff] %v1625
    %s1628 = smul.u32 6, 3
    %s1629 = smul.addr %s1628, 8
    %s1630 = scalar_lea.vmem [#allocation2], %s1629
    %v1631 = vld [vmem:[%s1630] sm:$0xff]
    %v1632 = vld [vmem:[%s1630 + $0x8] sm:$0xff]
    %v1633 = vld [vmem:[%s1630 + $0x10] sm:$0xff]
    %v1634 = vadd.f32 %v1631, %v452
    %v1635 = vadd.f32 %v1632, %v454
    %v1636 = vadd.f32 %v1633, %v523
    %1637 = vmatprep.subr.mxu0 %v527
    %1638 = vmatpush1.msra.mxu0 %v526
    %1639 = vmatprep.subr.mxu0 %v530
    %1640 = vmatpush1.msra.mxu0 %v529
    %1641 = vmatprep.subr.mxu0 %v533
    %1642 = vmatpush1.msra.mxu0 %v532
    %1643 = vmatprep.subr.mxu0 %v536
    %1644 = vmatpush1.msra.mxu0 %v535
    %1645 = vmatprep.subr.mxu0 %v539
    %1646 = vmatpush1.msra.mxu0 %v538
    %1647 = vmatprep.subr.mxu0 %v542
    %1648 = vmatpush1.msra.mxu0 %v541
    %1649 = vmatprep.subr.mxu0 %v545
    %1650 = vmatpush1.msra.mxu0 %v544
    %1651 = vmatprep.subr.mxu0 %v548
    %1652 = vmatpush1.msra.mxu0 %v547
    %1653 = vmatprep.subr.mxu0 %v551
    %1654 = vmatpush1.msra.mxu0 %v550
    %1655 = vmatprep.subr.mxu0 %v554
    %1656 = vmatpush1.msra.mxu0 %v553
    %1657 = vmatprep.subr.mxu0 %v557
    %1658 = vmatpush1.msra.mxu0 %v556
    %1659 = vmatprep.subr.mxu0 %v560
    %1660 = vmatpush1.msra.mxu0 %v559
    %1661 = vmatprep.subr.mxu0 %v563
    %1662 = vmatpush1.msra.mxu0 %v562
    %1663 = vmatprep.subr.mxu0 %v566
    %1664 = vmatpush1.msra.mxu0 %v565
    %1665 = vmatprep.subr.mxu0 %v569
    %1666 = vmatpush1.msra.mxu0 %v568
    %1667 = vmatprep.subr.mxu0 %v572
    %1668 = vmatpush1.msra.mxu0 %v571
    %1669 = vmatprep.subr.mxu0 0.0
    %1670 = vmatpush1.msra.mxu0 0.0
    %1671 = vmatprep.subr.mxu0 0.0
    %1672 = vmatpush1.msra.mxu0 0.0
    %1673 = vmatprep.subr.mxu0 0.0
    %1674 = vmatpush1.msra.mxu0 0.0
    %1675 = vmatprep.subr.mxu0 0.0
    %1676 = vmatpush1.msra.mxu0 0.0
    %1677 = vmatprep.subr.mxu0 0.0
    %1678 = vmatpush1.msra.mxu0 0.0
    %1679 = vmatprep.subr.mxu0 0.0
    %1680 = vmatpush1.msra.mxu0 0.0
    %1681 = vmatprep.subr.mxu0 0.0
    %1682 = vmatpush1.msra.mxu0 0.0
    %1683 = vmatprep.subr.mxu0 0.0
    %1684 = vmatpush1.msra.mxu0 0.0
    %1685 = vmatprep.subr.mxu0 0.0
    %1686 = vmatpush1.msra.mxu0 0.0
    %1687 = vmatprep.subr.mxu0 0.0
    %1688 = vmatpush1.msra.mxu0 0.0
    %1689 = vmatprep.subr.mxu0 0.0
    %1690 = vmatpush1.msra.mxu0 0.0
    %1691 = vmatprep.subr.mxu0 0.0
    %1692 = vmatpush1.msra.mxu0 0.0
    %1693 = vmatprep.subr.mxu0 0.0
    %1694 = vmatpush1.msra.mxu0 0.0
    %1695 = vmatprep.subr.mxu0 0.0
    %1696 = vmatpush1.msra.mxu0 0.0
    %1697 = vmatprep.subr.mxu0 0.0
    %1698 = vmatpush1.msra.mxu0 0.0
    %1699 = vmatprep.subr.mxu0 0.0
    %1700 = vmatpush1.msra.mxu0 0.0
    %1701 = vmatprep.mubr.f32.mxu0 0.0
    %1702 = vmatmul.mubr.f32.gmra.mrb[0].mxu0 %v1625
    %v1703 = vpop.f32.mrb[0].mxu0
    %v1704 = vadd.f32 %v588, %v1703
    %v1705 = vpop.f32.mrb[0].mxu0
    %v1706 = vadd.f32 %v592, %v1705
    %1707 = vdwg.mxu0
    %1708 = vmatprep.subr.mxu0 0.0
    %1709 = vmatpush1.msra.mxu0 %v528
    %1710 = vmatprep.subr.mxu0 0.0
    %1711 = vmatpush1.msra.mxu0 %v531
    %1712 = vmatprep.subr.mxu0 0.0
    %1713 = vmatpush1.msra.mxu0 %v534
    %1714 = vmatprep.subr.mxu0 0.0
    %1715 = vmatpush1.msra.mxu0 %v537
    %1716 = vmatprep.subr.mxu0 0.0
    %1717 = vmatpush1.msra.mxu0 %v540
    %1718 = vmatprep.subr.mxu0 0.0
    %1719 = vmatpush1.msra.mxu0 %v543
    %1720 = vmatprep.subr.mxu0 0.0
    %1721 = vmatpush1.msra.mxu0 %v546
    %1722 = vmatprep.subr.mxu0 0.0
    %1723 = vmatpush1.msra.mxu0 %v549
    %1724 = vmatprep.subr.mxu0 0.0
    %1725 = vmatpush1.msra.mxu0 %v552
    %1726 = vmatprep.subr.mxu0 0.0
    %1727 = vmatpush1.msra.mxu0 %v555
    %1728 = vmatprep.subr.mxu0 0.0
    %1729 = vmatpush1.msra.mxu0 %v558
    %1730 = vmatprep.subr.mxu0 0.0
    %1731 = vmatpush1.msra.mxu0 %v561
    %1732 = vmatprep.subr.mxu0 0.0
    %1733 = vmatpush1.msra.mxu0 %v564
    %1734 = vmatprep.subr.mxu0 0.0
    %1735 = vmatpush1.msra.mxu0 %v567
    %1736 = vmatprep.subr.mxu0 0.0
    %1737 = vmatpush1.msra.mxu0 %v570
    %1738 = vmatprep.subr.mxu0 0.0
    %1739 = vmatpush1.msra.mxu0 %v573
    %1740 = vmatprep.subr.mxu0 0.0
    %1741 = vmatpush1.msra.mxu0 0.0
    %1742 = vmatprep.subr.mxu0 0.0
    %1743 = vmatpush1.msra.mxu0 0.0
    %1744 = vmatprep.subr.mxu0 0.0
    %1745 = vmatpush1.msra.mxu0 0.0
    %1746 = vmatprep.subr.mxu0 0.0
    %1747 = vmatpush1.msra.mxu0 0.0
    %1748 = vmatprep.subr.mxu0 0.0
    %1749 = vmatpush1.msra.mxu0 0.0
    %1750 = vmatprep.subr.mxu0 0.0
    %1751 = vmatpush1.msra.mxu0 0.0
    %1752 = vmatprep.subr.mxu0 0.0
    %1753 = vmatpush1.msra.mxu0 0.0
    %1754 = vmatprep.subr.mxu0 0.0
    %1755 = vmatpush1.msra.mxu0 0.0
    %1756 = vmatprep.subr.mxu0 0.0
    %1757 = vmatpush1.msra.mxu0 0.0
    %1758 = vmatprep.subr.mxu0 0.0
    %1759 = vmatpush1.msra.mxu0 0.0
    %1760 = vmatprep.subr.mxu0 0.0
    %1761 = vmatpush1.msra.mxu0 0.0
    %1762 = vmatprep.subr.mxu0 0.0
    %1763 = vmatpush1.msra.mxu0 0.0
    %1764 = vmatprep.subr.mxu0 0.0
    %1765 = vmatpush1.msra.mxu0 0.0
    %1766 = vmatprep.subr.mxu0 0.0
    %1767 = vmatpush1.msra.mxu0 0.0
    %1768 = vmatprep.subr.mxu0 0.0
    %1769 = vmatpush1.msra.mxu0 0.0
    %1770 = vmatprep.subr.mxu0 0.0
    %1771 = vmatpush1.msra.mxu0 0.0
    %1772 = vmatprep.mubr.f32.mxu0 0.0
    %1773 = vmatmul.mubr.f32.gmra.mrb[0].mxu0 %v1625
    %v1774 = vpop.f32.mrb[0].mxu0
    %v1775 = vadd.f32 %v596, %v1774
    %v1776 = vpop.f32.mrb[0].mxu0
    %1777 = vdwg.mxu0
    %v1778 = vadd.f32 %v1634, %v1704
    %v1779 = vxor.u32 %v1778, 2147483648
    %v1780 = vmul.f32 %v1779, 1.442695
    %v1781 = vpow.pop %v1780
    %v1782 = vadd.f32 %v1781, 1.0
    %v1783 = vrcp.pop %v1782
    %v1784 = vmul.f32 1.0, %v1783
    %v1785 = vadd.f32 %v1635, %v1706
    %v1786 = vxor.u32 %v1785, 2147483648
    %v1787 = vmul.f32 %v1786, 1.442695
    %v1788 = vpow.pop %v1787
    %v1789 = vadd.f32 %v1788, 1.0
    %v1790 = vrcp.pop %v1789
    %v1791 = vmul.f32 1.0, %v1790
    %v1792 = vmul.f32 %v1784, %v1775
    %v1793 = vadd.f32 %v1636, %v1792
    %v1794 = vtanh.pop %v1793
    %v1795 = vsub.f32 1.0, %v1791
    %v1796 = vmul.f32 %v1795, %v1794
    %v1797 = vmul.f32 %v1791, %v1625
    %v1798 = vadd.f32 %v1796, %v1797
    %s1799 = scalar_lea.vmem [#allocation3], 48
    %1800 = vst [vmem:[%s1799] sm:$0xff] %v1798
    %s1801 = smul.u32 7, 3
    %s1802 = smul.addr %s1801, 8
    %s1803 = scalar_lea.vmem [#allocation2], %s1802
    %v1804 = vld [vmem:[%s1803] sm:$0xff]
    %v1805 = vld [vmem:[%s1803 + $0x8] sm:$0xff]
    %v1806 = vld [vmem:[%s1803 + $0x10] sm:$0xff]
    %v1807 = vadd.f32 %v1804, %v452
    %v1808 = vadd.f32 %v1805, %v454
    %v1809 = vadd.f32 %v1806, %v523
    %1810 = vmatprep.subr.mxu0 %v527
    %1811 = vmatpush1.msra.mxu0 %v526
    %1812 = vmatprep.subr.mxu0 %v530
    %1813 = vmatpush1.msra.mxu0 %v529
    %1814 = vmatprep.subr.mxu0 %v533
    %1815 = vmatpush1.msra.mxu0 %v532
    %1816 = vmatprep.subr.mxu0 %v536
    %1817 = vmatpush1.msra.mxu0 %v535
    %1818 = vmatprep.subr.mxu0 %v539
    %1819 = vmatpush1.msra.mxu0 %v538
    %1820 = vmatprep.subr.mxu0 %v542
    %1821 = vmatpush1.msra.mxu0 %v541
    %1822 = vmatprep.subr.mxu0 %v545
    %1823 = vmatpush1.msra.mxu0 %v544
    %1824 = vmatprep.subr.mxu0 %v548
    %1825 = vmatpush1.msra.mxu0 %v547
    %1826 = vmatprep.subr.mxu0 %v551
    %1827 = vmatpush1.msra.mxu0 %v550
    %1828 = vmatprep.subr.mxu0 %v554
    %1829 = vmatpush1.msra.mxu0 %v553
    %1830 = vmatprep.subr.mxu0 %v557
    %1831 = vmatpush1.msra.mxu0 %v556
    %1832 = vmatprep.subr.mxu0 %v560
    %1833 = vmatpush1.msra.mxu0 %v559
    %1834 = vmatprep.subr.mxu0 %v563
    %1835 = vmatpush1.msra.mxu0 %v562
    %1836 = vmatprep.subr.mxu0 %v566
    %1837 = vmatpush1.msra.mxu0 %v565
    %1838 = vmatprep.subr.mxu0 %v569
    %1839 = vmatpush1.msra.mxu0 %v568
    %1840 = vmatprep.subr.mxu0 %v572
    %1841 = vmatpush1.msra.mxu0 %v571
    %1842 = vmatprep.subr.mxu0 0.0
    %1843 = vmatpush1.msra.mxu0 0.0
    %1844 = vmatprep.subr.mxu0 0.0
    %1845 = vmatpush1.msra.mxu0 0.0
    %1846 = vmatprep.subr.mxu0 0.0
    %1847 = vmatpush1.msra.mxu0 0.0
    %1848 = vmatprep.subr.mxu0 0.0
    %1849 = vmatpush1.msra.mxu0 0.0
    %1850 = vmatprep.subr.mxu0 0.0
    %1851 = vmatpush1.msra.mxu0 0.0
    %1852 = vmatprep.subr.mxu0 0.0
    %1853 = vmatpush1.msra.mxu0 0.0
    %1854 = vmatprep.subr.mxu0 0.0
    %1855 = vmatpush1.msra.mxu0 0.0
    %1856 = vmatprep.subr.mxu0 0.0
    %1857 = vmatpush1.msra.mxu0 0.0
    %1858 = vmatprep.subr.mxu0 0.0
    %1859 = vmatpush1.msra.mxu0 0.0
    %1860 = vmatprep.subr.mxu0 0.0
    %1861 = vmatpush1.msra.mxu0 0.0
    %1862 = vmatprep.subr.mxu0 0.0
    %1863 = vmatpush1.msra.mxu0 0.0
    %1864 = vmatprep.subr.mxu0 0.0
    %1865 = vmatpush1.msra.mxu0 0.0
    %1866 = vmatprep.subr.mxu0 0.0
    %1867 = vmatpush1.msra.mxu0 0.0
    %1868 = vmatprep.subr.mxu0 0.0
    %1869 = vmatpush1.msra.mxu0 0.0
    %1870 = vmatprep.subr.mxu0 0.0
    %1871 = vmatpush1.msra.mxu0 0.0
    %1872 = vmatprep.subr.mxu0 0.0
    %1873 = vmatpush1.msra.mxu0 0.0
    %1874 = vmatprep.mubr.f32.mxu0 0.0
    %1875 = vmatmul.mubr.f32.gmra.mrb[0].mxu0 %v1798
    %v1876 = vpop.f32.mrb[0].mxu0
    %v1877 = vadd.f32 %v588, %v1876
    %v1878 = vpop.f32.mrb[0].mxu0
    %v1879 = vadd.f32 %v592, %v1878
    %1880 = vdwg.mxu0
    %1881 = vmatprep.subr.mxu0 0.0
    %1882 = vmatpush1.msra.mxu0 %v528
    %1883 = vmatprep.subr.mxu0 0.0
    %1884 = vmatpush1.msra.mxu0 %v531
    %1885 = vmatprep.subr.mxu0 0.0
    %1886 = vmatpush1.msra.mxu0 %v534
    %1887 = vmatprep.subr.mxu0 0.0
    %1888 = vmatpush1.msra.mxu0 %v537
    %1889 = vmatprep.subr.mxu0 0.0
    %1890 = vmatpush1.msra.mxu0 %v540
    %1891 = vmatprep.subr.mxu0 0.0
    %1892 = vmatpush1.msra.mxu0 %v543
    %1893 = vmatprep.subr.mxu0 0.0
    %1894 = vmatpush1.msra.mxu0 %v546
    %1895 = vmatprep.subr.mxu0 0.0
    %1896 = vmatpush1.msra.mxu0 %v549
    %1897 = vmatprep.subr.mxu0 0.0
    %1898 = vmatpush1.msra.mxu0 %v552
    %1899 = vmatprep.subr.mxu0 0.0
    %1900 = vmatpush1.msra.mxu0 %v555
    %1901 = vmatprep.subr.mxu0 0.0
    %1902 = vmatpush1.msra.mxu0 %v558
    %1903 = vmatprep.subr.mxu0 0.0
    %1904 = vmatpush1.msra.mxu0 %v561
    %1905 = vmatprep.subr.mxu0 0.0
    %1906 = vmatpush1.msra.mxu0 %v564
    %1907 = vmatprep.subr.mxu0 0.0
    %1908 = vmatpush1.msra.mxu0 %v567
    %1909 = vmatprep.subr.mxu0 0.0
    %1910 = vmatpush1.msra.mxu0 %v570
    %1911 = vmatprep.subr.mxu0 0.0
    %1912 = vmatpush1.msra.mxu0 %v573
    %1913 = vmatprep.subr.mxu0 0.0
    %1914 = vmatpush1.msra.mxu0 0.0
    %1915 = vmatprep.subr.mxu0 0.0
    %1916 = vmatpush1.msra.mxu0 0.0
    %1917 = vmatprep.subr.mxu0 0.0
    %1918 = vmatpush1.msra.mxu0 0.0
    %1919 = vmatprep.subr.mxu0 0.0
    %1920 = vmatpush1.msra.mxu0 0.0
    %1921 = vmatprep.subr.mxu0 0.0
    %1922 = vmatpush1.msra.mxu0 0.0
    %1923 = vmatprep.subr.mxu0 0.0
    %1924 = vmatpush1.msra.mxu0 0.0
    %1925 = vmatprep.subr.mxu0 0.0
    %1926 = vmatpush1.msra.mxu0 0.0
    %1927 = vmatprep.subr.mxu0 0.0
    %1928 = vmatpush1.msra.mxu0 0.0
    %1929 = vmatprep.subr.mxu0 0.0
    %1930 = vmatpush1.msra.mxu0 0.0
    %1931 = vmatprep.subr.mxu0 0.0
    %1932 = vmatpush1.msra.mxu0 0.0
    %1933 = vmatprep.subr.mxu0 0.0
    %1934 = vmatpush1.msra.mxu0 0.0
    %1935 = vmatprep.subr.mxu0 0.0
    %1936 = vmatpush1.msra.mxu0 0.0
    %1937 = vmatprep.subr.mxu0 0.0
    %1938 = vmatpush1.msra.mxu0 0.0
    %1939 = vmatprep.subr.mxu0 0.0
    %1940 = vmatpush1.msra.mxu0 0.0
    %1941 = vmatprep.subr.mxu0 0.0
    %1942 = vmatpush1.msra.mxu0 0.0
    %1943 = vmatprep.subr.mxu0 0.0
    %1944 = vmatpush1.msra.mxu0 0.0
    %1945 = vmatprep.mubr.f32.mxu0 0.0
    %1946 = vmatmul.mubr.f32.gmra.mrb[0].mxu0 %v1798
    %v1947 = vpop.f32.mrb[0].mxu0
    %v1948 = vadd.f32 %v596, %v1947
    %v1949 = vpop.f32.mrb[0].mxu0
    %1950 = vdwg.mxu0
    %v1951 = vadd.f32 %v1807, %v1877
    %v1952 = vxor.u32 %v1951, 2147483648
    %v1953 = vmul.f32 %v1952, 1.442695
    %v1954 = vpow.pop %v1953
    %v1955 = vadd.f32 %v1954, 1.0
    %v1956 = vrcp.pop %v1955
    %v1957 = vmul.f32 1.0, %v1956
    %v1958 = vadd.f32 %v1808, %v1879
    %v1959 = vxor.u32 %v1958, 2147483648
    %v1960 = vmul.f32 %v1959, 1.442695
    %v1961 = vpow.pop %v1960
    %v1962 = vadd.f32 %v1961, 1.0
    %v1963 = vrcp.pop %v1962
    %v1964 = vmul.f32 1.0, %v1963
    %v1965 = vmul.f32 %v1957, %v1948
    %v1966 = vadd.f32 %v1809, %v1965
    %v1967 = vtanh.pop %v1966
    %v1968 = vsub.f32 1.0, %v1964
    %v1969 = vmul.f32 %v1968, %v1967
    %v1970 = vmul.f32 %v1964, %v1798
    %v1971 = vadd.f32 %v1969, %v1970
    %s1972 = scalar_lea.vmem [#allocation3], 56
    %1973 = vst [vmem:[%s1972] sm:$0xff] %v1971
    %v1974 = vld [vmem:[#allocation3] sm:$0xff]
    %v1975 = vld [vmem:[#allocation3 + $0x8] sm:$0xff]
    %v1976 = vld [vmem:[#allocation3 + $0x10] sm:$0xff]
    %v1977 = vld [vmem:[#allocation3 + $0x18] sm:$0xff]
    %v1978 = vld [vmem:[#allocation3 + $0x20] sm:$0xff]
    %v1979 = vld [vmem:[#allocation3 + $0x28] sm:$0xff]
    %v1980 = vld [vmem:[#allocation3 + $0x30] sm:$0xff]
    %v1981 = vld [vmem:[#allocation3 + $0x38] sm:$0xff]
    %v1982 = vld [vmem:[#allocation9] sm:$0xff]
    %v1983 = vld [vmem:[#allocation9 + $0x8] sm:$0xff]
    %v1984 = vld [vmem:[#allocation9 + $0x10] sm:$0xff]
    %v1985 = vld [vmem:[#allocation9 + $0x18] sm:$0xff]
    %v1986 = vld [vmem:[#allocation9 + $0x20] sm:$0xff]
    %v1987 = vld [vmem:[#allocation9 + $0x28] sm:$0xff]
    %v1988 = vld [vmem:[#allocation9 + $0x30] sm:$0xff]
    %v1989 = vld [vmem:[#allocation9 + $0x38] sm:$0xff]
    %v1990 = vld [vmem:[#allocation9 + $0x40] sm:$0xff]
    %v1991 = vld [vmem:[#allocation9 + $0x48] sm:$0xff]
    %v1992 = vld [vmem:[#allocation9 + $0x50] sm:$0xff]
    %v1993 = vld [vmem:[#allocation9 + $0x58] sm:$0xff]
    %v1994 = vld [vmem:[#allocation9 + $0x60] sm:$0xff]
    %v1995 = vld [vmem:[#allocation9 + $0x68] sm:$0xff]
    %v1996 = vld [vmem:[#allocation9 + $0x70] sm:$0xff]
    %v1997 = vld [vmem:[#allocation9 + $0x78] sm:$0xff]
    %v1998 = vld [vmem:[%s8] sm:$0x1]
    %v2000 = vlaneseq
    %v2001 = vshrl.u32 %v2000, 7
    %v2002 = vsub.s32 0, %v2001
    %v2003 = vrot.slane %v1998, %v2002
    %2005 = vmatprep.subr.mxu0 0.0
    %2006 = vmatpush1.msra.mxu0 %v1982
    %2007 = vmatprep.subr.mxu0 0.0
    %2008 = vmatpush1.msra.mxu0 %v1983
    %2009 = vmatprep.subr.mxu0 0.0
    %2010 = vmatpush1.msra.mxu0 %v1984
    %2011 = vmatprep.subr.mxu0 0.0
    %2012 = vmatpush1.msra.mxu0 %v1985
    %2013 = vmatprep.subr.mxu0 0.0
    %2014 = vmatpush1.msra.mxu0 %v1986
    %2015 = vmatprep.subr.mxu0 0.0
    %2016 = vmatpush1.msra.mxu0 %v1987
    %2017 = vmatprep.subr.mxu0 0.0
    %2018 = vmatpush1.msra.mxu0 %v1988
    %2019 = vmatprep.subr.mxu0 0.0
    %2020 = vmatpush1.msra.mxu0 %v1989
    %2021 = vmatprep.subr.mxu0 0.0
    %2022 = vmatpush1.msra.mxu0 %v1990
    %2023 = vmatprep.subr.mxu0 0.0
    %2024 = vmatpush1.msra.mxu0 %v1991
    %2025 = vmatprep.subr.mxu0 0.0
    %2026 = vmatpush1.msra.mxu0 %v1992
    %2027 = vmatprep.subr.mxu0 0.0
    %2028 = vmatpush1.msra.mxu0 %v1993
    %2029 = vmatprep.subr.mxu0 0.0
    %2030 = vmatpush1.msra.mxu0 %v1994
    %2031 = vmatprep.subr.mxu0 0.0
    %2032 = vmatpush1.msra.mxu0 %v1995
    %2033 = vmatprep.subr.mxu0 0.0
    %2034 = vmatpush1.msra.mxu0 %v1996
    %2035 = vmatprep.subr.mxu0 0.0
    %2036 = vmatpush1.msra.mxu0 %v1997
    %2037 = vmatprep.subr.mxu0 0.0
    %2038 = vmatpush1.msra.mxu0 0.0
    %2039 = vmatprep.subr.mxu0 0.0
    %2040 = vmatpush1.msra.mxu0 0.0
    %2041 = vmatprep.subr.mxu0 0.0
    %2042 = vmatpush1.msra.mxu0 0.0
    %2043 = vmatprep.subr.mxu0 0.0
    %2044 = vmatpush1.msra.mxu0 0.0
    %2045 = vmatprep.subr.mxu0 0.0
    %2046 = vmatpush1.msra.mxu0 0.0
    %2047 = vmatprep.subr.mxu0 0.0
    %2048 = vmatpush1.msra.mxu0 0.0
    %2049 = vmatprep.subr.mxu0 0.0
    %2050 = vmatpush1.msra.mxu0 0.0
    %2051 = vmatprep.subr.mxu0 0.0
    %2052 = vmatpush1.msra.mxu0 0.0
    %2053 = vmatprep.subr.mxu0 0.0
    %2054 = vmatpush1.msra.mxu0 0.0
    %2055 = vmatprep.subr.mxu0 0.0
    %2056 = vmatpush1.msra.mxu0 0.0
    %2057 = vmatprep.subr.mxu0 0.0
    %2058 = vmatpush1.msra.mxu0 0.0
    %2059 = vmatprep.subr.mxu0 0.0
    %2060 = vmatpush1.msra.mxu0 0.0
    %2061 = vmatprep.subr.mxu0 0.0
    %2062 = vmatpush1.msra.mxu0 0.0
    %2063 = vmatprep.subr.mxu0 0.0
    %2064 = vmatpush1.msra.mxu0 0.0
    %2065 = vmatprep.subr.mxu0 0.0
    %2066 = vmatpush1.msra.mxu0 0.0
    %2067 = vmatprep.subr.mxu0 0.0
    %2068 = vmatpush1.msra.mxu0 0.0
    %2069 = vmatprep.mubr.f32.mxu0 0.0
    %2070 = vmatmul.mubr.f32.gmra.mrb[0].mxu0 %v1974
    %v2071 = vpop.f32.mrb[0].mxu0
    %v2072 = vadd.f32 %v2003, %v2071
    %v2073 = vpop.f32.mrb[0].mxu0
    %2074 = vmatprep.mubr.f32.mxu0 0.0
    %2075 = vmatmul.mubr.f32.gmra.mrb[0].mxu0 %v1975
    %v2076 = vpop.f32.mrb[0].mxu0
    %v2077 = vadd.f32 %v2003, %v2076
    %v2078 = vpop.f32.mrb[0].mxu0
    %2079 = vmatprep.mubr.f32.mxu0 0.0
    %2080 = vmatmul.mubr.f32.gmra.mrb[0].mxu0 %v1976
    %v2081 = vpop.f32.mrb[0].mxu0
    %v2082 = vadd.f32 %v2003, %v2081
    %v2083 = vpop.f32.mrb[0].mxu0
    %2084 = vmatprep.mubr.f32.mxu0 0.0
    %2085 = vmatmul.mubr.f32.gmra.mrb[0].mxu0 %v1977
    %v2086 = vpop.f32.mrb[0].mxu0
    %v2087 = vadd.f32 %v2003, %v2086
    %v2088 = vpop.f32.mrb[0].mxu0
    %2089 = vmatprep.mubr.f32.mxu0 0.0
    %2090 = vmatmul.mubr.f32.gmra.mrb[0].mxu0 %v1978
    %v2091 = vpop.f32.mrb[0].mxu0
    %v2092 = vadd.f32 %v2003, %v2091
    %v2093 = vpop.f32.mrb[0].mxu0
    %2094 = vmatprep.mubr.f32.mxu0 0.0
    %2095 = vmatmul.mubr.f32.gmra.mrb[0].mxu0 %v1979
    %v2096 = vpop.f32.mrb[0].mxu0
    %v2097 = vadd.f32 %v2003, %v2096
    %v2098 = vpop.f32.mrb[0].mxu0
    %2099 = vmatprep.mubr.f32.mxu0 0.0
    %2100 = vmatmul.mubr.f32.gmra.mrb[0].mxu0 %v1980
    %v2101 = vpop.f32.mrb[0].mxu0
    %v2102 = vadd.f32 %v2003, %v2101
    %v2103 = vpop.f32.mrb[0].mxu0
    %2104 = vmatprep.mubr.f32.mxu0 0.0
    %2105 = vmatmul.mubr.f32.gmra.mrb[0].mxu0 %v1981
    %v2106 = vpop.f32.mrb[0].mxu0
    %v2107 = vadd.f32 %v2003, %v2106
    %v2108 = vpop.f32.mrb[0].mxu0
    %2109 = vdwg.mxu0
    %2110 = vmax.xlane.f32.xlu0 %v2072
    %v2111 = vpop.xlane.xlu0 %2110
    %2112 = vmax.xlane.f32.xlu0 %v2077
    %v2113 = vpop.xlane.xlu0 %2112
    %2114 = vmax.xlane.f32.xlu0 %v2082
    %v2115 = vpop.xlane.xlu0 %2114
    %2116 = vmax.xlane.f32.xlu0 %v2087
    %v2117 = vpop.xlane.xlu0 %2116
    %2118 = vmax.xlane.f32.xlu0 %v2092
    %v2119 = vpop.xlane.xlu0 %2118
    %2120 = vmax.xlane.f32.xlu0 %v2097
    %v2121 = vpop.xlane.xlu0 %2120
    %2122 = vmax.xlane.f32.xlu0 %v2102
    %v2123 = vpop.xlane.xlu0 %2122
    %2124 = vmax.xlane.f32.xlu0 %v2107
    %v2125 = vpop.xlane.xlu0 %2124
    %v2126 = vsub.f32 %v2072, %v2111
    %v2127 = vsub.f32 %v2077, %v2113
    %v2128 = vsub.f32 %v2082, %v2115
    %v2129 = vsub.f32 %v2087, %v2117
    %v2130 = vsub.f32 %v2092, %v2119
    %v2131 = vsub.f32 %v2097, %v2121
    %v2132 = vsub.f32 %v2102, %v2123
    %v2133 = vsub.f32 %v2107, %v2125
    %v2134 = vmul.f32 %v2126, 1.442695
    %v2135 = vpow.pop %v2134
    %v2136 = vmul.f32 %v2127, 1.442695
    %v2137 = vpow.pop %v2136
    %v2138 = vmul.f32 %v2128, 1.442695
    %v2139 = vpow.pop %v2138
    %v2140 = vmul.f32 %v2129, 1.442695
    %v2141 = vpow.pop %v2140
    %v2142 = vmul.f32 %v2130, 1.442695
    %v2143 = vpow.pop %v2142
    %v2144 = vmul.f32 %v2131, 1.442695
    %v2145 = vpow.pop %v2144
    %v2146 = vmul.f32 %v2132, 1.442695
    %v2147 = vpow.pop %v2146
    %v2148 = vmul.f32 %v2133, 1.442695
    %v2149 = vpow.pop %v2148
    %2150 = vadd.xlane.f32.xlu0 %v2135
    %v2151 = vpop.xlane.xlu0 %2150
    %2152 = vadd.xlane.f32.xlu0 %v2137
    %v2153 = vpop.xlane.xlu0 %2152
    %2154 = vadd.xlane.f32.xlu0 %v2139
    %v2155 = vpop.xlane.xlu0 %2154
    %2156 = vadd.xlane.f32.xlu0 %v2141
    %v2157 = vpop.xlane.xlu0 %2156
    %2158 = vadd.xlane.f32.xlu0 %v2143
    %v2159 = vpop.xlane.xlu0 %2158
    %2160 = vadd.xlane.f32.xlu0 %v2145
    %v2161 = vpop.xlane.xlu0 %2160
    %2162 = vadd.xlane.f32.xlu0 %v2147
    %v2163 = vpop.xlane.xlu0 %2162
    %2164 = vadd.xlane.f32.xlu0 %v2149
    %v2165 = vpop.xlane.xlu0 %2164
    %v2166 = vlog2.pop %v2151
    %v2167 = vmul.f32 %v2166, 0.6931472
    %v2168 = vlog2.pop %v2153
    %v2169 = vmul.f32 %v2168, 0.6931472
    %v2170 = vlog2.pop %v2155
    %v2171 = vmul.f32 %v2170, 0.6931472
    %v2172 = vlog2.pop %v2157
    %v2173 = vmul.f32 %v2172, 0.6931472
    %v2174 = vlog2.pop %v2159
    %v2175 = vmul.f32 %v2174, 0.6931472
    %v2176 = vlog2.pop %v2161
    %v2177 = vmul.f32 %v2176, 0.6931472
    %v2178 = vlog2.pop %v2163
    %v2179 = vmul.f32 %v2178, 0.6931472
    %v2180 = vlog2.pop %v2165
    %v2181 = vmul.f32 %v2180, 0.6931472
    %v2182 = vsub.f32 %v2126, %v2167
    %v2183 = vsub.f32 %v2127, %v2169
    %v2184 = vsub.f32 %v2128, %v2171
    %v2185 = vsub.f32 %v2129, %v2173
    %v2186 = vsub.f32 %v2130, %v2175
    %v2187 = vsub.f32 %v2131, %v2177
    %v2188 = vsub.f32 %v2132, %v2179
    %v2189 = vsub.f32 %v2133, %v2181
    %2190 = vst [vmem:[#allocation10] sm:$0xff] %v2182
    %2191 = vst [vmem:[#allocation10 + $0x8] sm:$0xff] %v2183
    %2192 = vst [vmem:[#allocation10 + $0x10] sm:$0xff] %v2184
    %2193 = vst [vmem:[#allocation10 + $0x18] sm:$0xff] %v2185
    %2194 = vst [vmem:[#allocation10 + $0x20] sm:$0xff] %v2186
    %2195 = vst [vmem:[#allocation10 + $0x28] sm:$0xff] %v2187
    %2196 = vst [vmem:[#allocation10 + $0x30] sm:$0xff] %v2188
    %2197 = vst [vmem:[#allocation10 + $0x38] sm:$0xff] %v2189
    %vm2198 = vcmask 261120
    %2199 = vst.msk [vmem:[#allocation11] sm:$0xff] %vm2198, %v1971
    // Predicated region
    $region50: #{tpu_custom_call.1} parent=1 // pred_check
      _
    $region51: #{tpu_custom_call.1} parent=1 // pred_check_branch
      %2201 = sbr.rel (0) target = $region53
    $region52: #{tpu_custom_call.1} parent=1 // pred_region
      %s2203 = ssub.s32 1024, 1024
      %2204 = vsyncadd [#allocation6], %s2203
      %s2205 = sshll.u32 [#allocation10], 4
      %s2206 = int_to_ptr.vmem [resolvable:$true] %s2205
      %2211 = dma.vmem_to_hbm [thread:$0]  %s2206, 1024, %s9, [#allocation6], 128, 128, 8
    $region53: #{tpu_custom_call.1} parent=1 // pred_fallthru
      _
    // Predicated region
    $region54: #{tpu_custom_call.1} parent=1 // pred_check
      _
    $region55: #{tpu_custom_call.1} parent=1 // pred_check_branch
      %2213 = sbr.rel (0) target = $region57
    $region56: #{tpu_custom_call.1} parent=1 // pred_region
      %s2215 = ssub.s32 128, 128
      %2216 = vsyncadd [#allocation12], %s2215
      %s2218 = sshll.u32 [#allocation11], 4
      %s2219 = int_to_ptr.vmem [resolvable:$true] %s2218
      %2221 = dma.vmem_to_hbm [thread:$0]  %s2219, 128, %s10, [#allocation12]
    $region57: #{tpu_custom_call.1} parent=1 // pred_fallthru
      _
    // Predicated region
    $region58: #{tpu_custom_call.1} parent=1 // pred_check
      _
    $region59: #{tpu_custom_call.1} parent=1 // pred_check_branch
      %2223 = sbr.rel (0) target = $region61
    $region60: #{tpu_custom_call.1} parent=1 // pred_region
      %2224 = dma.done [#allocation6], 1024
    $region61: #{tpu_custom_call.1} parent=1 // pred_fallthru
      _
    // Predicated region
    $region62: #{tpu_custom_call.1} parent=1 // pred_check
      _
    $region63: #{tpu_custom_call.1} parent=1 // pred_check_branch
      %2226 = sbr.rel (0) target = $region65
    $region64: #{tpu_custom_call.1} parent=1 // pred_region
      %2227 = dma.done [#allocation12], 128
    $region65: #{tpu_custom_call.1} parent=1 // pred_fallthru
      _
    %2228 = vsyncpa [#allocation5], 1
    %2229 = vsyncpa [#allocation8], 1
    %2230 = vsyncpa [#allocation6], 1
    %2231 = vsyncpa [#allocation12], 1

</llo_original>
